<compile_context>
chip_gen: v5e
topology: v5e:2x2
jax: 0.10.0
libtpu: 0.0.40
codegen_flags: <defaults>
</compile_context>

<pallas_src>
import jax
import jax.numpy as jnp
from jax.experimental import pallas as pl
from jax.experimental.pallas import tpu as pltpu

KSIZE = 3  # the module's 3x3 kernels


# --------------------------------------------------------------------------
# Frequency split (wrapper side; no Pallas FFT primitive exists).
# --------------------------------------------------------------------------
def _pad_to_power_of_two(x):
    _, _, h, w = x.shape
    hp = 2 ** ((h - 1).bit_length())
    wp = 2 ** ((w - 1).bit_length())
    if hp != h or wp != w:
        x = jnp.pad(x, ((0, 0), (0, 0), (0, hp - h), (0, wp - w)))
    return x, (h, w)


def _gaussian_filter(hp, wp, sigma):
    yy, xx = jnp.meshgrid(jnp.linspace(-1.0, 1.0, hp),
                          jnp.linspace(-1.0, 1.0, wp), indexing="ij")
    return jnp.exp(-(xx * xx + yy * yy) / (2.0 * sigma * sigma))


def _low_freq_image(x, sigma):
    """Re(ifft2(fft2(x_pad) * G))[:h,:w] computed with rfft2/irfft2.

    x is real, so only the Hermitian-symmetric part of the (asymmetric) mask G
    contributes to the real part of the inverse transform; the anti-symmetric
    part produces a purely imaginary image that the reference discards.  Using
    the symmetrized half-plane mask therefore reproduces the original result
    exactly (up to float rounding) at roughly half the FFT cost.
    """
    xp, (h, w) = _pad_to_power_of_two(x)
    hp, wp = xp.shape[-2], xp.shape[-1]
    g = _gaussian_filter(hp, wp, sigma)                    # fftshifted layout
    g_un = jnp.fft.ifftshift(g, axes=(-2, -1))             # natural freq order
    # G(-k mod N) = roll(flip(G), 1) along each axis.
    g_neg = jnp.roll(jnp.flip(g_un, axis=(-2, -1)), shift=(1, 1), axis=(-2, -1))
    g_sym = 0.5 * (g_un + g_neg)
    f = jnp.fft.rfft2(xp, axes=(-2, -1))
    low = jnp.fft.irfft2(f * g_sym[..., :, : wp // 2 + 1],
                         s=(hp, wp), axes=(-2, -1))
    return low[..., :h, :w].astype(x.dtype)


# --------------------------------------------------------------------------
# Kernel
# --------------------------------------------------------------------------
def _make_kernel(nb, c_in, c_out, h, w, top, bot, dil):
    hw = h * w
    pad_len = (top + h + bot) * w
    lanes = nb * hw

    def kernel(x_ref, low_ref, w_ref, out_ref, xp_ref, lp_ref, hp_ref):
        # ---- zero-pad (rows only) scratch planes; each element stored once.
        top_z = jnp.zeros((c_in, top * w), jnp.float32)
        bot_z = jnp.zeros((c_in, bot * w), jnp.float32)
        for i in range(nb):
            base = i * pad_len                      # lane-tile aligned (static)
            x_img = x_ref[i].astype(jnp.float32)    # (C, HW), lane-dense
            low_img = low_ref[i].astype(jnp.float32)
            for plane, data in ((xp_ref, x_img), (lp_ref, low_img),
                                (hp_ref, x_img - low_img)):   # high = x - low
                plane[:, pl.ds(base, top * w)] = top_z
                plane[:, pl.ds(base + (top + h) * w, bot * w)] = bot_z
                plane[:, pl.ds(base + top * w, hw)] = data

        # ---- border masks over the image-major concatenated lane axis.
        col = jax.lax.broadcasted_iota(jnp.int32, (1, lanes), 1) % w
        masks = {o: (col + o >= 0) & (col + o < w) for o in {-1, 1, -dil, dil}}

        # ---- build the fused im2col operand in registers (no VMEM round-trip):
        # rows = [high taps (dil 1) | low taps (dil d) | global taps (dil d) | 1]
        parts = []
        for plane, d in ((hp_ref, 1), (lp_ref, dil), (xp_ref, dil)):
            for ky in range(KSIZE):
                for kx in range(KSIZE):
                    start = (top + d * (ky - 1)) * w + d * (kx - 1)
                    if nb == 1:
                        patch = plane[:, pl.ds(start, hw)]
                    else:
                        patch = jnp.concatenate(
                            [plane[:, pl.ds(i * pad_len + start, hw)]
                             for i in range(nb)], axis=1)        # (C, NB*HW)
                    off = d * (kx - 1)
                    if off != 0:
                        patch = jnp.where(masks[off], patch, 0.0)
                    parts.append(patch)
        parts.append(jnp.ones((1, lanes), jnp.float32))           # bias row
        im2col = jnp.concatenate(parts, axis=0)                   # (27C+1, NB*HW)

        # ---- one block-diagonal MXU pass for all three branches (BN folded).
        acc = jnp.dot(w_ref[...], im2col,
                      preferred_element_type=jnp.float32)         # (3Cout, NB*HW)
        total = (jnp.maximum(acc[:c_out], 0.0)
                 + jnp.maximum(acc[c_out:2 * c_out], 0.0)
                 + jnp.maximum(acc[2 * c_out:], 0.0))             # (Cout, NB*HW)

        for i in range(nb):                                       # lane-dense stores
            out_ref[i] = total[:, i * hw:(i + 1) * hw].astype(out_ref.dtype)

    return kernel


def _default_grid_blocks(n):
    """1 grid step on single-TC chips; 2 parallel steps on 2-TC chips."""
    try:
        kind = jax.devices()[0].device_kind.lower()
        cores = 2 if any(t in kind for t in ("v7", "v5p", "v4")) else 1
    except Exception:  # pragma: no cover - defensive
        cores = 1
    for b in range(min(n, cores), 0, -1):
        if n % b == 0:
            return b
    return 1


# --------------------------------------------------------------------------
# Wrapper
# --------------------------------------------------------------------------
def triple_kernel_fourier_convolution(x, params, *, dilation=2, sigma=10.0,
                                      eps=1e-5, grid_blocks=None):
    n, c_in, h, w = x.shape
    c_out = params["high_freq_conv_weight"].shape[0]
    hw = h * w

    # Row padding so every conv tap is a pure lane-offset slice; round `top`
    # and `bot` so the interior copy, both zero strips and pad_len are all
    # lane-tile (128) aligned.
    top = dilation + 1
    bot = dilation + 1
    if 128 % w == 0:
        rows_per_tile = 128 // w
        top = -(-top // rows_per_tile) * rows_per_tile
        bot = -(-bot // rows_per_tile) * rows_per_tile
        bot += (-(top + h + bot)) % rows_per_tile
    # TODO(synk): for W not dividing 128, pad W itself to a lane-friendly width.
    pad_len = (top + h + bot) * w

    # ---- frequency split (stays in jnp.fft; no Pallas FFT primitive) -------
    low = _low_freq_image(x, sigma)

    # Lane-dense flattening: spatial axis on the 128-wide lane dim.
    x_flat = x.reshape(n, c_in, hw)
    low_flat = low.reshape(n, c_in, hw)

    # ---- fold BN (inference mode) into the weights and a bias column -------
    # TODO(synk): training-mode BatchNorm (batch statistics) is not implemented;
    # the BN layers are applied as inference-mode per-channel affines.
    def w2d(wgt):  # (Cout, Cin, 3, 3) -> (Cout, 9*Cin), column order (ky, kx, c)
        return jnp.transpose(wgt, (0, 2, 3, 1)).reshape(
            c_out, KSIZE * KSIZE * c_in).astype(jnp.float32)

    def fold_bn(prefix):
        s = params[prefix + "_weight"] * jax.lax.rsqrt(
            params[prefix + "_running_var"] + eps)
        t = params[prefix + "_bias"] - params[prefix + "_running_mean"] * s
        return s.astype(jnp.float32), t.astype(jnp.float32)

    zeros_blk = jnp.zeros((c_out, KSIZE * KSIZE * c_in), jnp.float32)
    rows = []
    branches = (("high_freq_conv_weight", "high_freq_bn"),
                ("low_freq_conv_weight", "low_freq_bn"),
                ("global_conv_weight", "global_bn"))
    for idx, (wname, bnpref) in enumerate(branches):
        s, t = fold_bn(bnpref)
        cols = [zeros_blk, zeros_blk, zeros_blk]
        cols[idx] = w2d(params[wname]) * s[:, None]       # BN scale folded in
        rows.append(jnp.concatenate(cols + [t[:, None]], axis=1))
    w_fused = jnp.concatenate(rows, axis=0)               # (3*Cout, 27*Cin + 1)
    k_cols = 3 * KSIZE * KSIZE * c_in + 1

    # ---- grid: batch folded into 1 (single-TC) or 2 (v7x) blocks ----------
    if grid_blocks is None:
        grid_blocks = _default_grid_blocks(n)
    nb = n // grid_blocks

    kernel = _make_kernel(nb, c_in, c_out, h, w, top, bot, dilation)

    # NOTE: at real sizes, re-budget VMEM for v7x (64 MiB): tile the spatial
    # axis and/or keep planes in bf16, and set vmem_limit_bytes. At this size
    # the scratch (3 planes of C x NB*pad_len f32) is a few tens of KiB.
    out_flat = pl.pallas_call(
        kernel,
        out_shape=jax.ShapeDtypeStruct((n, c_out, hw), x.dtype),
        grid_spec=pltpu.PrefetchScalarGridSpec(
            num_scalar_prefetch=0,
            grid=(grid_blocks,),
            in_specs=[
                pl.BlockSpec((nb, c_in, hw), lambda i: (i, 0, 0)),
                pl.BlockSpec((nb, c_in, hw), lambda i: (i, 0, 0)),
                pl.BlockSpec((3 * c_out, k_cols), lambda i: (0, 0)),
            ],
            out_specs=pl.BlockSpec((nb, c_out, hw), lambda i: (i, 0, 0)),
            scratch_shapes=[
                pltpu.VMEM((c_in, nb * pad_len), jnp.float32),   # padded x
                pltpu.VMEM((c_in, nb * pad_len), jnp.float32),   # padded low
                pltpu.VMEM((c_in, nb * pad_len), jnp.float32),   # padded high
            ],
        ),
        compiler_params=pltpu.CompilerParams(
            dimension_semantics=("parallel",)),
    )(x_flat, low_flat, w_fused)

    return out_flat.reshape(n, c_out, h, w)


# --------------------------------------------------------------------------
# Plain-JAX reference mirroring the PyTorch forward (BN in eval mode).
# --------------------------------------------------------------------------
def _reference(x, params, *, dilation=2, sigma=10.0, eps=1e-5):
    _, _, h, w = x.shape
    xp, _ = _pad_to_power_of_two(x)
    f = jnp.fft.fft2(xp, axes=(-2, -1))
    fsh = jnp.fft.fftshift(f, axes=(-2, -1))
    g = _gaussian_filter(xp.shape[-2], xp.shape[-1], sigma)

    def back(fs):
        img = jnp.fft.ifft2(jnp.fft.ifftshift(fs, axes=(-2, -1)), axes=(-2, -1))
        return jnp.real(img)[..., :h, :w].astype(x.dtype)

    high = back(fsh * (1.0 - g))
    low = back(fsh * g)

    def branch(inp, wgt, d, prefix):
        p = d * (KSIZE // 2)
        conv = jax.lax.conv_general_dilated(
            inp, wgt, window_strides=(1, 1), padding=((p, p), (p, p)),
            rhs_dilation=(d, d),
            dimension_numbers=("NCHW", "OIHW", "NCHW"),
            precision=jax.lax.Precision.HIGHEST)
        s = params[prefix + "_weight"] * jax.lax.rsqrt(
            params[prefix + "_running_var"] + eps)
        t = params[prefix + "_bias"] - params[prefix + "_running_mean"] * s
        return jnp.maximum(conv * s[None, :, None, None]
                           + t[None, :, None, None], 0.0)

    hi = branch(high, params["high_freq_conv_weight"], 1, "high_freq_bn")
    lo = branch(low, params["low_freq_conv_weight"], dilation, "low_freq_bn")
    gl = branch(x, params["global_conv_weight"], dilation, "global_bn")
    return hi + (lo + gl)


if __name__ == "__main__":
    key = jax.random.PRNGKey(0)
    keys = jax.random.split(key, 16)

    n, c_in, c_out, h, w = 2, 4, 4, 16, 16
    x = jax.random.normal(keys[0], (n, c_in, h, w), dtype=jnp.float32)

    fan_in = c_in * KSIZE * KSIZE

    def conv_w(k):
        return (jax.random.normal(k, (c_out, c_in, KSIZE, KSIZE), jnp.float32)
                / jnp.sqrt(fan_in))

    params = {
        "high_freq_conv_weight": conv_w(keys[1]),
        "low_freq_conv_weight": conv_w(keys[2]),
        "global_conv_weight": conv_w(keys[3]),
    }
    for i, prefix in enumerate(("high_freq_bn", "low_freq_bn", "global_bn")):
        kg, kb, km, kv = keys[4 + 4 * i: 8 + 4 * i]
        params[prefix + "_weight"] = 1.0 + 0.1 * jax.random.normal(kg, (c_out,), jnp.float32)
        params[prefix + "_bias"] = 0.1 * jax.random.normal(kb, (c_out,), jnp.float32)
        params[prefix + "_running_mean"] = 0.1 * jax.random.normal(km, (c_out,), jnp.float32)
        params[prefix + "_running_var"] = 0.5 + jnp.abs(jax.random.normal(kv, (c_out,), jnp.float32))

    out = jax.jit(triple_kernel_fourier_convolution)(x, params)
    out = jax.block_until_ready(out)

    ref = _reference(x, params)
    assert out.shape == (n, c_out, h, w)
    assert jnp.allclose(out, ref, atol=1e-3, rtol=1e-3), \
        float(jnp.max(jnp.abs(out - ref)))

    print("KERNEL_OK")
</pallas_src>

<mosaic_0001>
module attributes {stable_mosaic.version = 11 : i64} {
  func.func @kernel(%arg0: i32, %arg1: memref<2x4x256xf32, #tpu.memory_space<vmem>>, %arg2: memref<2x4x256xf32, #tpu.memory_space<vmem>>, %arg3: memref<12x109xf32, #tpu.memory_space<vmem>>, %arg4: memref<2x4x256xf32, #tpu.memory_space<vmem>>, %arg5: memref<4x1024xf32, #tpu.memory_space<vmem>>, %arg6: memref<4x1024xf32, #tpu.memory_space<vmem>>, %arg7: memref<4x1024xf32, #tpu.memory_space<vmem>>) attributes {dimension_semantics = [#tpu.dimension_semantics<parallel>], iteration_bounds = array<i64: 1>, scalar_prefetch = 0 : i64, scratch_operands = 3 : i64, tpu.core_type = #tpu.core_type<tc>, window_params = [{transform_indices = @transform_0, window_bounds = array<i64: 2, 4, 256>}, {transform_indices = @transform_1, window_bounds = array<i64: 2, 4, 256>}, {pipeline_mode = #tpu.pipeline_mode<synchronous>, transform_indices = @transform_2, window_bounds = array<i64: 12, 109>}, {transform_indices = @transform_3, window_bounds = array<i64: 2, 4, 256>}]} {
    %cst = arith.constant 0.000000e+00 : f32
    %0 = vector.broadcast %cst : f32 to vector<4x128xf32>
    %cst_0 = arith.constant 0.000000e+00 : f32
    %1 = vector.broadcast %cst_0 : f32 to vector<4x128xf32>
    %c0 = arith.constant 0 : index
    %c0_1 = arith.constant 0 : index
    %c0_2 = arith.constant 0 : index
    %2 = vector.load %arg1[%c0, %c0_1, %c0_2] : memref<2x4x256xf32, #tpu.memory_space<vmem>>, vector<1x4x256xf32>
    %3 = vector.shape_cast %2 : vector<1x4x256xf32> to vector<4x256xf32>
    %c0_3 = arith.constant 0 : index
    %c0_4 = arith.constant 0 : index
    %c0_5 = arith.constant 0 : index
    %4 = vector.load %arg2[%c0_3, %c0_4, %c0_5] : memref<2x4x256xf32, #tpu.memory_space<vmem>>, vector<1x4x256xf32>
    %5 = vector.shape_cast %4 : vector<1x4x256xf32> to vector<4x256xf32>
    %6 = arith.subf %3, %5 : vector<4x256xf32>
    %c0_6 = arith.constant 0 : index
    %c0_7 = arith.constant 0 : index
    %7 = vector.load %arg5[%c0_6, %c0_7] : memref<4x1024xf32, #tpu.memory_space<vmem>>, vector<4x128xf32>
    tpu.vector_store %arg5[%c0_6, %c0_7], %0 {strides = array<i32>} : memref<4x1024xf32, #tpu.memory_space<vmem>>, vector<4x128xf32>,
    %c0_8 = arith.constant 0 : index
    %c384 = arith.constant 384 : index
    %8 = vector.load %arg5[%c0_8, %c384] : memref<4x1024xf32, #tpu.memory_space<vmem>>, vector<4x128xf32>
    tpu.vector_store %arg5[%c0_8, %c384], %1 {strides = array<i32>} : memref<4x1024xf32, #tpu.memory_space<vmem>>, vector<4x128xf32>,
    %c0_9 = arith.constant 0 : index
    %c128 = arith.constant 128 : index
    %9 = vector.load %arg5[%c0_9, %c128] : memref<4x1024xf32, #tpu.memory_space<vmem>>, vector<4x256xf32>
    tpu.vector_store %arg5[%c0_9, %c128], %3 {strides = array<i32>} : memref<4x1024xf32, #tpu.memory_space<vmem>>, vector<4x256xf32>,
    %c0_10 = arith.constant 0 : index
    %c0_11 = arith.constant 0 : index
    %10 = vector.load %arg6[%c0_10, %c0_11] : memref<4x1024xf32, #tpu.memory_space<vmem>>, vector<4x128xf32>
    tpu.vector_store %arg6[%c0_10, %c0_11], %0 {strides = array<i32>} : memref<4x1024xf32, #tpu.memory_space<vmem>>, vector<4x128xf32>,
    %c0_12 = arith.constant 0 : index
    %c384_13 = arith.constant 384 : index
    %11 = vector.load %arg6[%c0_12, %c384_13] : memref<4x1024xf32, #tpu.memory_space<vmem>>, vector<4x128xf32>
    tpu.vector_store %arg6[%c0_12, %c384_13], %1 {strides = array<i32>} : memref<4x1024xf32, #tpu.memory_space<vmem>>, vector<4x128xf32>,
    %c0_14 = arith.constant 0 : index
    %c128_15 = arith.constant 128 : index
    %12 = vector.load %arg6[%c0_14, %c128_15] : memref<4x1024xf32, #tpu.memory_space<vmem>>, vector<4x256xf32>
    tpu.vector_store %arg6[%c0_14, %c128_15], %5 {strides = array<i32>} : memref<4x1024xf32, #tpu.memory_space<vmem>>, vector<4x256xf32>,
    %c0_16 = arith.constant 0 : index
    %c0_17 = arith.constant 0 : index
    %13 = vector.load %arg7[%c0_16, %c0_17] : memref<4x1024xf32, #tpu.memory_space<vmem>>, vector<4x128xf32>
    tpu.vector_store %arg7[%c0_16, %c0_17], %0 {strides = array<i32>} : memref<4x1024xf32, #tpu.memory_space<vmem>>, vector<4x128xf32>,
    %c0_18 = arith.constant 0 : index
    %c384_19 = arith.constant 384 : index
    %14 = vector.load %arg7[%c0_18, %c384_19] : memref<4x1024xf32, #tpu.memory_space<vmem>>, vector<4x128xf32>
    tpu.vector_store %arg7[%c0_18, %c384_19], %1 {strides = array<i32>} : memref<4x1024xf32, #tpu.memory_space<vmem>>, vector<4x128xf32>,
    %c0_20 = arith.constant 0 : index
    %c128_21 = arith.constant 128 : index
    %15 = vector.load %arg7[%c0_20, %c128_21] : memref<4x1024xf32, #tpu.memory_space<vmem>>, vector<4x256xf32>
    tpu.vector_store %arg7[%c0_20, %c128_21], %6 {strides = array<i32>} : memref<4x1024xf32, #tpu.memory_space<vmem>>, vector<4x256xf32>,
    %c1 = arith.constant 1 : index
    %c0_22 = arith.constant 0 : index
    %c0_23 = arith.constant 0 : index
    %16 = vector.load %arg1[%c1, %c0_22, %c0_23] : memref<2x4x256xf32, #tpu.memory_space<vmem>>, vector<1x4x256xf32>
    %17 = vector.shape_cast %16 : vector<1x4x256xf32> to vector<4x256xf32>
    %c1_24 = arith.constant 1 : index
    %c0_25 = arith.constant 0 : index
    %c0_26 = arith.constant 0 : index
    %18 = vector.load %arg2[%c1_24, %c0_25, %c0_26] : memref<2x4x256xf32, #tpu.memory_space<vmem>>, vector<1x4x256xf32>
    %19 = vector.shape_cast %18 : vector<1x4x256xf32> to vector<4x256xf32>
    %20 = arith.subf %17, %19 : vector<4x256xf32>
    %c0_27 = arith.constant 0 : index
    %c512 = arith.constant 512 : index
    %21 = vector.load %arg5[%c0_27, %c512] : memref<4x1024xf32, #tpu.memory_space<vmem>>, vector<4x128xf32>
    tpu.vector_store %arg5[%c0_27, %c512], %0 {strides = array<i32>} : memref<4x1024xf32, #tpu.memory_space<vmem>>, vector<4x128xf32>,
    %c0_28 = arith.constant 0 : index
    %c896 = arith.constant 896 : index
    %22 = vector.load %arg5[%c0_28, %c896] : memref<4x1024xf32, #tpu.memory_space<vmem>>, vector<4x128xf32>
    tpu.vector_store %arg5[%c0_28, %c896], %1 {strides = array<i32>} : memref<4x1024xf32, #tpu.memory_space<vmem>>, vector<4x128xf32>,
    %c0_29 = arith.constant 0 : index
    %c640 = arith.constant 640 : index
    %23 = vector.load %arg5[%c0_29, %c640] : memref<4x1024xf32, #tpu.memory_space<vmem>>, vector<4x256xf32>
    tpu.vector_store %arg5[%c0_29, %c640], %17 {strides = array<i32>} : memref<4x1024xf32, #tpu.memory_space<vmem>>, vector<4x256xf32>,
    %c0_30 = arith.constant 0 : index
    %c512_31 = arith.constant 512 : index
    %24 = vector.load %arg6[%c0_30, %c512_31] : memref<4x1024xf32, #tpu.memory_space<vmem>>, vector<4x128xf32>
    tpu.vector_store %arg6[%c0_30, %c512_31], %0 {strides = array<i32>} : memref<4x1024xf32, #tpu.memory_space<vmem>>, vector<4x128xf32>,
    %c0_32 = arith.constant 0 : index
    %c896_33 = arith.constant 896 : index
    %25 = vector.load %arg6[%c0_32, %c896_33] : memref<4x1024xf32, #tpu.memory_space<vmem>>, vector<4x128xf32>
    tpu.vector_store %arg6[%c0_32, %c896_33], %1 {strides = array<i32>} : memref<4x1024xf32, #tpu.memory_space<vmem>>, vector<4x128xf32>,
    %c0_34 = arith.constant 0 : index
    %c640_35 = arith.constant 640 : index
    %26 = vector.load %arg6[%c0_34, %c640_35] : memref<4x1024xf32, #tpu.memory_space<vmem>>, vector<4x256xf32>
    tpu.vector_store %arg6[%c0_34, %c640_35], %19 {strides = array<i32>} : memref<4x1024xf32, #tpu.memory_space<vmem>>, vector<4x256xf32>,
    %c0_36 = arith.constant 0 : index
    %c512_37 = arith.constant 512 : index
    %27 = vector.load %arg7[%c0_36, %c512_37] : memref<4x1024xf32, #tpu.memory_space<vmem>>, vector<4x128xf32>
    tpu.vector_store %arg7[%c0_36, %c512_37], %0 {strides = array<i32>} : memref<4x1024xf32, #tpu.memory_space<vmem>>, vector<4x128xf32>,
    %c0_38 = arith.constant 0 : index
    %c896_39 = arith.constant 896 : index
    %28 = vector.load %arg7[%c0_38, %c896_39] : memref<4x1024xf32, #tpu.memory_space<vmem>>, vector<4x128xf32>
    tpu.vector_store %arg7[%c0_38, %c896_39], %1 {strides = array<i32>} : memref<4x1024xf32, #tpu.memory_space<vmem>>, vector<4x128xf32>,
    %c0_40 = arith.constant 0 : index
    %c640_41 = arith.constant 640 : index
    %29 = vector.load %arg7[%c0_40, %c640_41] : memref<4x1024xf32, #tpu.memory_space<vmem>>, vector<4x256xf32>
    tpu.vector_store %arg7[%c0_40, %c640_41], %20 {strides = array<i32>} : memref<4x1024xf32, #tpu.memory_space<vmem>>, vector<4x256xf32>,
    %30 = tpu.iota {dimensions = array<i32: 1>} : vector<1x512xi32>
    %c16_i32 = arith.constant 16 : i32
    %c0_i32 = arith.constant 0 : i32
    %31 = arith.cmpi eq, %c16_i32, %c0_i32 : i32
    %c1_i32 = arith.constant 1 : i32
    %32 = arith.select %31, %c1_i32, %c16_i32 : i32
    %33 = vector.broadcast %32 : i32 to vector<1x512xi32>
    %34 = arith.remsi %30, %33 : vector<1x512xi32>
    %c0_i32_42 = arith.constant 0 : i32
    %35 = vector.broadcast %c0_i32_42 : i32 to vector<1x512xi32>
    %36 = arith.cmpi ne, %34, %35 : vector<1x512xi32>
    %c0_i32_43 = arith.constant 0 : i32
    %37 = vector.broadcast %c0_i32_43 : i32 to vector<1x512xi32>
    %38 = arith.cmpi slt, %34, %37 : vector<1x512xi32>
    %c0_i32_44 = arith.constant 0 : i32
    %39 = arith.cmpi slt, %32, %c0_i32_44 : i32
    %40 = vector.broadcast %39 : i1 to vector<1x512xi1>
    %41 = vector.broadcast %40 : vector<1x512xi1> to vector<1x512xi1>
    %42 = arith.xori %38, %41 : vector<1x512xi1>
    %43 = arith.andi %42, %36 : vector<1x512xi1>
    %44 = vector.broadcast %32 : i32 to vector<1x512xi32>
    %45 = arith.addi %34, %44 : vector<1x512xi32>
    %46 = arith.select %43, %45, %34 : vector<1x512xi1>, vector<1x512xi32>
    %c1_i32_45 = arith.constant 1 : i32
    %47 = vector.broadcast %c1_i32_45 : i32 to vector<1x512xi32>
    %48 = arith.addi %46, %47 : vector<1x512xi32>
    %c0_i32_46 = arith.constant 0 : i32
    %49 = vector.broadcast %c0_i32_46 : i32 to vector<1x512xi32>
    %50 = arith.cmpi sge, %48, %49 : vector<1x512xi32>
    %c1_i32_47 = arith.constant 1 : i32
    %51 = vector.broadcast %c1_i32_47 : i32 to vector<1x512xi32>
    %52 = arith.addi %46, %51 : vector<1x512xi32>
    %c16_i32_48 = arith.constant 16 : i32
    %53 = vector.broadcast %c16_i32_48 : i32 to vector<1x512xi32>
    %54 = arith.cmpi slt, %52, %53 : vector<1x512xi32>
    %55 = arith.andi %50, %54 : vector<1x512xi1>
    %c2_i32 = arith.constant 2 : i32
    %56 = vector.broadcast %c2_i32 : i32 to vector<1x512xi32>
    %57 = arith.addi %46, %56 : vector<1x512xi32>
    %c0_i32_49 = arith.constant 0 : i32
    %58 = vector.broadcast %c0_i32_49 : i32 to vector<1x512xi32>
    %59 = arith.cmpi sge, %57, %58 : vector<1x512xi32>
    %c2_i32_50 = arith.constant 2 : i32
    %60 = vector.broadcast %c2_i32_50 : i32 to vector<1x512xi32>
    %61 = arith.addi %46, %60 : vector<1x512xi32>
    %c16_i32_51 = arith.constant 16 : i32
    %62 = vector.broadcast %c16_i32_51 : i32 to vector<1x512xi32>
    %63 = arith.cmpi slt, %61, %62 : vector<1x512xi32>
    %64 = arith.andi %59, %63 : vector<1x512xi1>
    %c-1_i32 = arith.constant -1 : i32
    %65 = vector.broadcast %c-1_i32 : i32 to vector<1x512xi32>
    %66 = arith.addi %46, %65 : vector<1x512xi32>
    %c0_i32_52 = arith.constant 0 : i32
    %67 = vector.broadcast %c0_i32_52 : i32 to vector<1x512xi32>
    %68 = arith.cmpi sge, %66, %67 : vector<1x512xi32>
    %c-1_i32_53 = arith.constant -1 : i32
    %69 = vector.broadcast %c-1_i32_53 : i32 to vector<1x512xi32>
    %70 = arith.addi %46, %69 : vector<1x512xi32>
    %c16_i32_54 = arith.constant 16 : i32
    %71 = vector.broadcast %c16_i32_54 : i32 to vector<1x512xi32>
    %72 = arith.cmpi slt, %70, %71 : vector<1x512xi32>
    %73 = arith.andi %68, %72 : vector<1x512xi1>
    %c-2_i32 = arith.constant -2 : i32
    %74 = vector.broadcast %c-2_i32 : i32 to vector<1x512xi32>
    %75 = arith.addi %46, %74 : vector<1x512xi32>
    %c0_i32_55 = arith.constant 0 : i32
    %76 = vector.broadcast %c0_i32_55 : i32 to vector<1x512xi32>
    %77 = arith.cmpi sge, %75, %76 : vector<1x512xi32>
    %c-2_i32_56 = arith.constant -2 : i32
    %78 = vector.broadcast %c-2_i32_56 : i32 to vector<1x512xi32>
    %79 = arith.addi %46, %78 : vector<1x512xi32>
    %c16_i32_57 = arith.constant 16 : i32
    %80 = vector.broadcast %c16_i32_57 : i32 to vector<1x512xi32>
    %81 = arith.cmpi slt, %79, %80 : vector<1x512xi32>
    %82 = arith.andi %77, %81 : vector<1x512xi1>
    %c0_58 = arith.constant 0 : index
    %c111 = arith.constant 111 : index
    %83 = vector.load %arg7[%c0_58, %c111] : memref<4x1024xf32, #tpu.memory_space<vmem>>, vector<4x256xf32>
    %c0_59 = arith.constant 0 : index
    %c623 = arith.constant 623 : index
    %84 = vector.load %arg7[%c0_59, %c623] : memref<4x1024xf32, #tpu.memory_space<vmem>>, vector<4x256xf32>
    %85 = tpu.concatenate %83, %84 in 1 : vector<4x256xf32>, vector<4x256xf32> -> vector<4x512xf32>
    %cst_60 = arith.constant 0.000000e+00 : f32
    %86 = vector.shape_cast %73 : vector<1x512xi1> to vector<1x512xi1>
    %87 = vector.broadcast %86 : vector<1x512xi1> to vector<4x512xi1>
    %88 = vector.broadcast %cst_60 : f32 to vector<4x512xf32>
    %89 = arith.select %87, %85, %88 : vector<4x512xi1>, vector<4x512xf32>
    %c0_61 = arith.constant 0 : index
    %c112 = arith.constant 112 : index
    %90 = vector.load %arg7[%c0_61, %c112] : memref<4x1024xf32, #tpu.memory_space<vmem>>, vector<4x256xf32>
    %c0_62 = arith.constant 0 : index
    %c624 = arith.constant 624 : index
    %91 = vector.load %arg7[%c0_62, %c624] : memref<4x1024xf32, #tpu.memory_space<vmem>>, vector<4x256xf32>
    %92 = tpu.concatenate %90, %91 in 1 : vector<4x256xf32>, vector<4x256xf32> -> vector<4x512xf32>
    %c0_63 = arith.constant 0 : index
    %c113 = arith.constant 113 : index
    %93 = vector.load %arg7[%c0_63, %c113] : memref<4x1024xf32, #tpu.memory_space<vmem>>, vector<4x256xf32>
    %c0_64 = arith.constant 0 : index
    %c625 = arith.constant 625 : index
    %94 = vector.load %arg7[%c0_64, %c625] : memref<4x1024xf32, #tpu.memory_space<vmem>>, vector<4x256xf32>
    %95 = tpu.concatenate %93, %94 in 1 : vector<4x256xf32>, vector<4x256xf32> -> vector<4x512xf32>
    %cst_65 = arith.constant 0.000000e+00 : f32
    %96 = vector.shape_cast %55 : vector<1x512xi1> to vector<1x512xi1>
    %97 = vector.broadcast %96 : vector<1x512xi1> to vector<4x512xi1>
    %98 = vector.broadcast %cst_65 : f32 to vector<4x512xf32>
    %99 = arith.select %97, %95, %98 : vector<4x512xi1>, vector<4x512xf32>
    %c0_66 = arith.constant 0 : index
    %c127 = arith.constant 127 : index
    %100 = vector.load %arg7[%c0_66, %c127] : memref<4x1024xf32, #tpu.memory_space<vmem>>, vector<4x256xf32>
    %c0_67 = arith.constant 0 : index
    %c639 = arith.constant 639 : index
    %101 = vector.load %arg7[%c0_67, %c639] : memref<4x1024xf32, #tpu.memory_space<vmem>>, vector<4x256xf32>
    %102 = tpu.concatenate %100, %101 in 1 : vector<4x256xf32>, vector<4x256xf32> -> vector<4x512xf32>
    %cst_68 = arith.constant 0.000000e+00 : f32
    %103 = vector.shape_cast %73 : vector<1x512xi1> to vector<1x512xi1>
    %104 = vector.broadcast %103 : vector<1x512xi1> to vector<4x512xi1>
    %105 = vector.broadcast %cst_68 : f32 to vector<4x512xf32>
    %106 = arith.select %104, %102, %105 : vector<4x512xi1>, vector<4x512xf32>
    %c0_69 = arith.constant 0 : index
    %c128_70 = arith.constant 128 : index
    %107 = vector.load %arg7[%c0_69, %c128_70] : memref<4x1024xf32, #tpu.memory_space<vmem>>, vector<4x256xf32>
    %c0_71 = arith.constant 0 : index
    %c640_72 = arith.constant 640 : index
    %108 = vector.load %arg7[%c0_71, %c640_72] : memref<4x1024xf32, #tpu.memory_space<vmem>>, vector<4x256xf32>
    %109 = tpu.concatenate %107, %108 in 1 : vector<4x256xf32>, vector<4x256xf32> -> vector<4x512xf32>
    %c0_73 = arith.constant 0 : index
    %c129 = arith.constant 129 : index
    %110 = vector.load %arg7[%c0_73, %c129] : memref<4x1024xf32, #tpu.memory_space<vmem>>, vector<4x256xf32>
    %c0_74 = arith.constant 0 : index
    %c641 = arith.constant 641 : index
    %111 = vector.load %arg7[%c0_74, %c641] : memref<4x1024xf32, #tpu.memory_space<vmem>>, vector<4x256xf32>
    %112 = tpu.concatenate %110, %111 in 1 : vector<4x256xf32>, vector<4x256xf32> -> vector<4x512xf32>
    %cst_75 = arith.constant 0.000000e+00 : f32
    %113 = vector.shape_cast %55 : vector<1x512xi1> to vector<1x512xi1>
    %114 = vector.broadcast %113 : vector<1x512xi1> to vector<4x512xi1>
    %115 = vector.broadcast %cst_75 : f32 to vector<4x512xf32>
    %116 = arith.select %114, %112, %115 : vector<4x512xi1>, vector<4x512xf32>
    %c0_76 = arith.constant 0 : index
    %c143 = arith.constant 143 : index
    %117 = vector.load %arg7[%c0_76, %c143] : memref<4x1024xf32, #tpu.memory_space<vmem>>, vector<4x256xf32>
    %c0_77 = arith.constant 0 : index
    %c655 = arith.constant 655 : index
    %118 = vector.load %arg7[%c0_77, %c655] : memref<4x1024xf32, #tpu.memory_space<vmem>>, vector<4x256xf32>
    %119 = tpu.concatenate %117, %118 in 1 : vector<4x256xf32>, vector<4x256xf32> -> vector<4x512xf32>
    %cst_78 = arith.constant 0.000000e+00 : f32
    %120 = vector.shape_cast %73 : vector<1x512xi1> to vector<1x512xi1>
    %121 = vector.broadcast %120 : vector<1x512xi1> to vector<4x512xi1>
    %122 = vector.broadcast %cst_78 : f32 to vector<4x512xf32>
    %123 = arith.select %121, %119, %122 : vector<4x512xi1>, vector<4x512xf32>
    %c0_79 = arith.constant 0 : index
    %c144 = arith.constant 144 : index
    %124 = vector.load %arg7[%c0_79, %c144] : memref<4x1024xf32, #tpu.memory_space<vmem>>, vector<4x256xf32>
    %c0_80 = arith.constant 0 : index
    %c656 = arith.constant 656 : index
    %125 = vector.load %arg7[%c0_80, %c656] : memref<4x1024xf32, #tpu.memory_space<vmem>>, vector<4x256xf32>
    %126 = tpu.concatenate %124, %125 in 1 : vector<4x256xf32>, vector<4x256xf32> -> vector<4x512xf32>
    %c0_81 = arith.constant 0 : index
    %c145 = arith.constant 145 : index
    %127 = vector.load %arg7[%c0_81, %c145] : memref<4x1024xf32, #tpu.memory_space<vmem>>, vector<4x256xf32>
    %c0_82 = arith.constant 0 : index
    %c657 = arith.constant 657 : index
    %128 = vector.load %arg7[%c0_82, %c657] : memref<4x1024xf32, #tpu.memory_space<vmem>>, vector<4x256xf32>
    %129 = tpu.concatenate %127, %128 in 1 : vector<4x256xf32>, vector<4x256xf32> -> vector<4x512xf32>
    %cst_83 = arith.constant 0.000000e+00 : f32
    %130 = vector.shape_cast %55 : vector<1x512xi1> to vector<1x512xi1>
    %131 = vector.broadcast %130 : vector<1x512xi1> to vector<4x512xi1>
    %132 = vector.broadcast %cst_83 : f32 to vector<4x512xf32>
    %133 = arith.select %131, %129, %132 : vector<4x512xi1>, vector<4x512xf32>
    %c0_84 = arith.constant 0 : index
    %c94 = arith.constant 94 : index
    %134 = vector.load %arg6[%c0_84, %c94] : memref<4x1024xf32, #tpu.memory_space<vmem>>, vector<4x256xf32>
    %c0_85 = arith.constant 0 : index
    %c606 = arith.constant 606 : index
    %135 = vector.load %arg6[%c0_85, %c606] : memref<4x1024xf32, #tpu.memory_space<vmem>>, vector<4x256xf32>
    %136 = tpu.concatenate %134, %135 in 1 : vector<4x256xf32>, vector<4x256xf32> -> vector<4x512xf32>
    %cst_86 = arith.constant 0.000000e+00 : f32
    %137 = vector.shape_cast %82 : vector<1x512xi1> to vector<1x512xi1>
    %138 = vector.broadcast %137 : vector<1x512xi1> to vector<4x512xi1>
    %139 = vector.broadcast %cst_86 : f32 to vector<4x512xf32>
    %140 = arith.select %138, %136, %139 : vector<4x512xi1>, vector<4x512xf32>
    %c0_87 = arith.constant 0 : index
    %c96 = arith.constant 96 : index
    %141 = vector.load %arg6[%c0_87, %c96] : memref<4x1024xf32, #tpu.memory_space<vmem>>, vector<4x256xf32>
    %c0_88 = arith.constant 0 : index
    %c608 = arith.constant 608 : index
    %142 = vector.load %arg6[%c0_88, %c608] : memref<4x1024xf32, #tpu.memory_space<vmem>>, vector<4x256xf32>
    %143 = tpu.concatenate %141, %142 in 1 : vector<4x256xf32>, vector<4x256xf32> -> vector<4x512xf32>
    %c0_89 = arith.constant 0 : index
    %c98 = arith.constant 98 : index
    %144 = vector.load %arg6[%c0_89, %c98] : memref<4x1024xf32, #tpu.memory_space<vmem>>, vector<4x256xf32>
    %c0_90 = arith.constant 0 : index
    %c610 = arith.constant 610 : index
    %145 = vector.load %arg6[%c0_90, %c610] : memref<4x1024xf32, #tpu.memory_space<vmem>>, vector<4x256xf32>
    %146 = tpu.concatenate %144, %145 in 1 : vector<4x256xf32>, vector<4x256xf32> -> vector<4x512xf32>
    %cst_91 = arith.constant 0.000000e+00 : f32
    %147 = vector.shape_cast %64 : vector<1x512xi1> to vector<1x512xi1>
    %148 = vector.broadcast %147 : vector<1x512xi1> to vector<4x512xi1>
    %149 = vector.broadcast %cst_91 : f32 to vector<4x512xf32>
    %150 = arith.select %148, %146, %149 : vector<4x512xi1>, vector<4x512xf32>
    %c0_92 = arith.constant 0 : index
    %c126 = arith.constant 126 : index
    %151 = vector.load %arg6[%c0_92, %c126] : memref<4x1024xf32, #tpu.memory_space<vmem>>, vector<4x256xf32>
    %c0_93 = arith.constant 0 : index
    %c638 = arith.constant 638 : index
    %152 = vector.load %arg6[%c0_93, %c638] : memref<4x1024xf32, #tpu.memory_space<vmem>>, vector<4x256xf32>
    %153 = tpu.concatenate %151, %152 in 1 : vector<4x256xf32>, vector<4x256xf32> -> vector<4x512xf32>
    %cst_94 = arith.constant 0.000000e+00 : f32
    %154 = vector.shape_cast %82 : vector<1x512xi1> to vector<1x512xi1>
    %155 = vector.broadcast %154 : vector<1x512xi1> to vector<4x512xi1>
    %156 = vector.broadcast %cst_94 : f32 to vector<4x512xf32>
    %157 = arith.select %155, %153, %156 : vector<4x512xi1>, vector<4x512xf32>
    %c0_95 = arith.constant 0 : index
    %c128_96 = arith.constant 128 : index
    %158 = vector.load %arg6[%c0_95, %c128_96] : memref<4x1024xf32, #tpu.memory_space<vmem>>, vector<4x256xf32>
    %c0_97 = arith.constant 0 : index
    %c640_98 = arith.constant 640 : index
    %159 = vector.load %arg6[%c0_97, %c640_98] : memref<4x1024xf32, #tpu.memory_space<vmem>>, vector<4x256xf32>
    %160 = tpu.concatenate %158, %159 in 1 : vector<4x256xf32>, vector<4x256xf32> -> vector<4x512xf32>
    %c0_99 = arith.constant 0 : index
    %c130 = arith.constant 130 : index
    %161 = vector.load %arg6[%c0_99, %c130] : memref<4x1024xf32, #tpu.memory_space<vmem>>, vector<4x256xf32>
    %c0_100 = arith.constant 0 : index
    %c642 = arith.constant 642 : index
    %162 = vector.load %arg6[%c0_100, %c642] : memref<4x1024xf32, #tpu.memory_space<vmem>>, vector<4x256xf32>
    %163 = tpu.concatenate %161, %162 in 1 : vector<4x256xf32>, vector<4x256xf32> -> vector<4x512xf32>
    %cst_101 = arith.constant 0.000000e+00 : f32
    %164 = vector.shape_cast %64 : vector<1x512xi1> to vector<1x512xi1>
    %165 = vector.broadcast %164 : vector<1x512xi1> to vector<4x512xi1>
    %166 = vector.broadcast %cst_101 : f32 to vector<4x512xf32>
    %167 = arith.select %165, %163, %166 : vector<4x512xi1>, vector<4x512xf32>
    %c0_102 = arith.constant 0 : index
    %c158 = arith.constant 158 : index
    %168 = vector.load %arg6[%c0_102, %c158] : memref<4x1024xf32, #tpu.memory_space<vmem>>, vector<4x256xf32>
    %c0_103 = arith.constant 0 : index
    %c670 = arith.constant 670 : index
    %169 = vector.load %arg6[%c0_103, %c670] : memref<4x1024xf32, #tpu.memory_space<vmem>>, vector<4x256xf32>
    %170 = tpu.concatenate %168, %169 in 1 : vector<4x256xf32>, vector<4x256xf32> -> vector<4x512xf32>
    %cst_104 = arith.constant 0.000000e+00 : f32
    %171 = vector.shape_cast %82 : vector<1x512xi1> to vector<1x512xi1>
    %172 = vector.broadcast %171 : vector<1x512xi1> to vector<4x512xi1>
    %173 = vector.broadcast %cst_104 : f32 to vector<4x512xf32>
    %174 = arith.select %172, %170, %173 : vector<4x512xi1>, vector<4x512xf32>
    %c0_105 = arith.constant 0 : index
    %c160 = arith.constant 160 : index
    %175 = vector.load %arg6[%c0_105, %c160] : memref<4x1024xf32, #tpu.memory_space<vmem>>, vector<4x256xf32>
    %c0_106 = arith.constant 0 : index
    %c672 = arith.constant 672 : index
    %176 = vector.load %arg6[%c0_106, %c672] : memref<4x1024xf32, #tpu.memory_space<vmem>>, vector<4x256xf32>
    %177 = tpu.concatenate %175, %176 in 1 : vector<4x256xf32>, vector<4x256xf32> -> vector<4x512xf32>
    %c0_107 = arith.constant 0 : index
    %c162 = arith.constant 162 : index
    %178 = vector.load %arg6[%c0_107, %c162] : memref<4x1024xf32, #tpu.memory_space<vmem>>, vector<4x256xf32>
    %c0_108 = arith.constant 0 : index
    %c674 = arith.constant 674 : index
    %179 = vector.load %arg6[%c0_108, %c674] : memref<4x1024xf32, #tpu.memory_space<vmem>>, vector<4x256xf32>
    %180 = tpu.concatenate %178, %179 in 1 : vector<4x256xf32>, vector<4x256xf32> -> vector<4x512xf32>
    %cst_109 = arith.constant 0.000000e+00 : f32
    %181 = vector.shape_cast %64 : vector<1x512xi1> to vector<1x512xi1>
    %182 = vector.broadcast %181 : vector<1x512xi1> to vector<4x512xi1>
    %183 = vector.broadcast %cst_109 : f32 to vector<4x512xf32>
    %184 = arith.select %182, %180, %183 : vector<4x512xi1>, vector<4x512xf32>
    %c0_110 = arith.constant 0 : index
    %c94_111 = arith.constant 94 : index
    %185 = vector.load %arg5[%c0_110, %c94_111] : memref<4x1024xf32, #tpu.memory_space<vmem>>, vector<4x256xf32>
    %c0_112 = arith.constant 0 : index
    %c606_113 = arith.constant 606 : index
    %186 = vector.load %arg5[%c0_112, %c606_113] : memref<4x1024xf32, #tpu.memory_space<vmem>>, vector<4x256xf32>
    %187 = tpu.concatenate %185, %186 in 1 : vector<4x256xf32>, vector<4x256xf32> -> vector<4x512xf32>
    %cst_114 = arith.constant 0.000000e+00 : f32
    %188 = vector.shape_cast %82 : vector<1x512xi1> to vector<1x512xi1>
    %189 = vector.broadcast %188 : vector<1x512xi1> to vector<4x512xi1>
    %190 = vector.broadcast %cst_114 : f32 to vector<4x512xf32>
    %191 = arith.select %189, %187, %190 : vector<4x512xi1>, vector<4x512xf32>
    %c0_115 = arith.constant 0 : index
    %c96_116 = arith.constant 96 : index
    %192 = vector.load %arg5[%c0_115, %c96_116] : memref<4x1024xf32, #tpu.memory_space<vmem>>, vector<4x256xf32>
    %c0_117 = arith.constant 0 : index
    %c608_118 = arith.constant 608 : index
    %193 = vector.load %arg5[%c0_117, %c608_118] : memref<4x1024xf32, #tpu.memory_space<vmem>>, vector<4x256xf32>
    %194 = tpu.concatenate %192, %193 in 1 : vector<4x256xf32>, vector<4x256xf32> -> vector<4x512xf32>
    %c0_119 = arith.constant 0 : index
    %c98_120 = arith.constant 98 : index
    %195 = vector.load %arg5[%c0_119, %c98_120] : memref<4x1024xf32, #tpu.memory_space<vmem>>, vector<4x256xf32>
    %c0_121 = arith.constant 0 : index
    %c610_122 = arith.constant 610 : index
    %196 = vector.load %arg5[%c0_121, %c610_122] : memref<4x1024xf32, #tpu.memory_space<vmem>>, vector<4x256xf32>
    %197 = tpu.concatenate %195, %196 in 1 : vector<4x256xf32>, vector<4x256xf32> -> vector<4x512xf32>
    %cst_123 = arith.constant 0.000000e+00 : f32
    %198 = vector.shape_cast %64 : vector<1x512xi1> to vector<1x512xi1>
    %199 = vector.broadcast %198 : vector<1x512xi1> to vector<4x512xi1>
    %200 = vector.broadcast %cst_123 : f32 to vector<4x512xf32>
    %201 = arith.select %199, %197, %200 : vector<4x512xi1>, vector<4x512xf32>
    %c0_124 = arith.constant 0 : index
    %c126_125 = arith.constant 126 : index
    %202 = vector.load %arg5[%c0_124, %c126_125] : memref<4x1024xf32, #tpu.memory_space<vmem>>, vector<4x256xf32>
    %c0_126 = arith.constant 0 : index
    %c638_127 = arith.constant 638 : index
    %203 = vector.load %arg5[%c0_126, %c638_127] : memref<4x1024xf32, #tpu.memory_space<vmem>>, vector<4x256xf32>
    %204 = tpu.concatenate %202, %203 in 1 : vector<4x256xf32>, vector<4x256xf32> -> vector<4x512xf32>
    %cst_128 = arith.constant 0.000000e+00 : f32
    %205 = vector.shape_cast %82 : vector<1x512xi1> to vector<1x512xi1>
    %206 = vector.broadcast %205 : vector<1x512xi1> to vector<4x512xi1>
    %207 = vector.broadcast %cst_128 : f32 to vector<4x512xf32>
    %208 = arith.select %206, %204, %207 : vector<4x512xi1>, vector<4x512xf32>
    %c0_129 = arith.constant 0 : index
    %c128_130 = arith.constant 128 : index
    %209 = vector.load %arg5[%c0_129, %c128_130] : memref<4x1024xf32, #tpu.memory_space<vmem>>, vector<4x256xf32>
    %c0_131 = arith.constant 0 : index
    %c640_132 = arith.constant 640 : index
    %210 = vector.load %arg5[%c0_131, %c640_132] : memref<4x1024xf32, #tpu.memory_space<vmem>>, vector<4x256xf32>
    %211 = tpu.concatenate %209, %210 in 1 : vector<4x256xf32>, vector<4x256xf32> -> vector<4x512xf32>
    %c0_133 = arith.constant 0 : index
    %c130_134 = arith.constant 130 : index
    %212 = vector.load %arg5[%c0_133, %c130_134] : memref<4x1024xf32, #tpu.memory_space<vmem>>, vector<4x256xf32>
    %c0_135 = arith.constant 0 : index
    %c642_136 = arith.constant 642 : index
    %213 = vector.load %arg5[%c0_135, %c642_136] : memref<4x1024xf32, #tpu.memory_space<vmem>>, vector<4x256xf32>
    %214 = tpu.concatenate %212, %213 in 1 : vector<4x256xf32>, vector<4x256xf32> -> vector<4x512xf32>
    %cst_137 = arith.constant 0.000000e+00 : f32
    %215 = vector.shape_cast %64 : vector<1x512xi1> to vector<1x512xi1>
    %216 = vector.broadcast %215 : vector<1x512xi1> to vector<4x512xi1>
    %217 = vector.broadcast %cst_137 : f32 to vector<4x512xf32>
    %218 = arith.select %216, %214, %217 : vector<4x512xi1>, vector<4x512xf32>
    %c0_138 = arith.constant 0 : index
    %c158_139 = arith.constant 158 : index
    %219 = vector.load %arg5[%c0_138, %c158_139] : memref<4x1024xf32, #tpu.memory_space<vmem>>, vector<4x256xf32>
    %c0_140 = arith.constant 0 : index
    %c670_141 = arith.constant 670 : index
    %220 = vector.load %arg5[%c0_140, %c670_141] : memref<4x1024xf32, #tpu.memory_space<vmem>>, vector<4x256xf32>
    %221 = tpu.concatenate %219, %220 in 1 : vector<4x256xf32>, vector<4x256xf32> -> vector<4x512xf32>
    %cst_142 = arith.constant 0.000000e+00 : f32
    %222 = vector.shape_cast %82 : vector<1x512xi1> to vector<1x512xi1>
    %223 = vector.broadcast %222 : vector<1x512xi1> to vector<4x512xi1>
    %224 = vector.broadcast %cst_142 : f32 to vector<4x512xf32>
    %225 = arith.select %223, %221, %224 : vector<4x512xi1>, vector<4x512xf32>
    %c0_143 = arith.constant 0 : index
    %c160_144 = arith.constant 160 : index
    %226 = vector.load %arg5[%c0_143, %c160_144] : memref<4x1024xf32, #tpu.memory_space<vmem>>, vector<4x256xf32>
    %c0_145 = arith.constant 0 : index
    %c672_146 = arith.constant 672 : index
    %227 = vector.load %arg5[%c0_145, %c672_146] : memref<4x1024xf32, #tpu.memory_space<vmem>>, vector<4x256xf32>
    %228 = tpu.concatenate %226, %227 in 1 : vector<4x256xf32>, vector<4x256xf32> -> vector<4x512xf32>
    %c0_147 = arith.constant 0 : index
    %c162_148 = arith.constant 162 : index
    %229 = vector.load %arg5[%c0_147, %c162_148] : memref<4x1024xf32, #tpu.memory_space<vmem>>, vector<4x256xf32>
    %c0_149 = arith.constant 0 : index
    %c674_150 = arith.constant 674 : index
    %230 = vector.load %arg5[%c0_149, %c674_150] : memref<4x1024xf32, #tpu.memory_space<vmem>>, vector<4x256xf32>
    %231 = tpu.concatenate %229, %230 in 1 : vector<4x256xf32>, vector<4x256xf32> -> vector<4x512xf32>
    %cst_151 = arith.constant 0.000000e+00 : f32
    %232 = vector.shape_cast %64 : vector<1x512xi1> to vector<1x512xi1>
    %233 = vector.broadcast %232 : vector<1x512xi1> to vector<4x512xi1>
    %234 = vector.broadcast %cst_151 : f32 to vector<4x512xf32>
    %235 = arith.select %233, %231, %234 : vector<4x512xi1>, vector<4x512xf32>
    %cst_152 = arith.constant 1.000000e+00 : f32
    %236 = vector.broadcast %cst_152 : f32 to vector<1x512xf32>
    %237 = tpu.concatenate %89, %92, %99, %106, %109, %116, %123, %126, %133, %140, %143, %150, %157, %160, %167, %174 in 0 : vector<4x512xf32>, vector<4x512xf32>, vector<4x512xf32>, vector<4x512xf32>, vector<4x512xf32>, vector<4x512xf32>, vector<4x512xf32>, vector<4x512xf32>, vector<4x512xf32>, vector<4x512xf32>, vector<4x512xf32>, vector<4x512xf32>, vector<4x512xf32>, vector<4x512xf32>, vector<4x512xf32>, vector<4x512xf32> -> vector<64x512xf32>
    %238 = tpu.concatenate %177, %184, %191, %194, %201, %208, %211, %218, %225, %228, %235, %236 in 0 : vector<4x512xf32>, vector<4x512xf32>, vector<4x512xf32>, vector<4x512xf32>, vector<4x512xf32>, vector<4x512xf32>, vector<4x512xf32>, vector<4x512xf32>, vector<4x512xf32>, vector<4x512xf32>, vector<4x512xf32>, vector<1x512xf32> -> vector<45x512xf32>
    %239 = tpu.concatenate %237, %238 in 0 : vector<64x512xf32>, vector<45x512xf32> -> vector<109x512xf32>
    %c0_153 = arith.constant 0 : index
    %c0_154 = arith.constant 0 : index
    %240 = vector.load %arg3[%c0_153, %c0_154] : memref<12x109xf32, #tpu.memory_space<vmem>>, vector<12x109xf32>
    %cst_155 = arith.constant dense<0.000000e+00> : vector<12x512xf32>
    %241 = tpu.matmul %240, %239, %cst_155 {dimension_numbers = #tpu.dot_dimension_numbers<[1], [0], [0], [1], [0, 0, 1, 1], [], []>} : vector<12x109xf32>, vector<109x512xf32>, vector<12x512xf32> -> vector<12x512xf32>
    %242 = vector.extract_strided_slice %241 {offsets = [0, 0], sizes = [4, 512], strides = [1, 1]} : vector<12x512xf32> to vector<4x512xf32>
    %cst_156 = arith.constant 0.000000e+00 : f32
    %243 = vector.broadcast %cst_156 : f32 to vector<4x512xf32>
    %244 = arith.maximumf %242, %243 : vector<4x512xf32>
    %245 = vector.extract_strided_slice %241 {offsets = [4, 0], sizes = [4, 512], strides = [1, 1]} : vector<12x512xf32> to vector<4x512xf32>
    %cst_157 = arith.constant 0.000000e+00 : f32
    %246 = vector.broadcast %cst_157 : f32 to vector<4x512xf32>
    %247 = arith.maximumf %245, %246 : vector<4x512xf32>
    %248 = arith.addf %244, %247 : vector<4x512xf32>
    %249 = vector.extract_strided_slice %241 {offsets = [8, 0], sizes = [4, 512], strides = [1, 1]} : vector<12x512xf32> to vector<4x512xf32>
    %cst_158 = arith.constant 0.000000e+00 : f32
    %250 = vector.broadcast %cst_158 : f32 to vector<4x512xf32>
    %251 = arith.maximumf %249, %250 : vector<4x512xf32>
    %252 = arith.addf %248, %251 : vector<4x512xf32>
    %253 = vector.extract_strided_slice %252 {offsets = [0, 0], sizes = [4, 256], strides = [1, 1]} : vector<4x512xf32> to vector<4x256xf32>
    %c0_159 = arith.constant 0 : index
    %c0_160 = arith.constant 0 : index
    %c0_161 = arith.constant 0 : index
    %254 = vector.load %arg4[%c0_159, %c0_160, %c0_161] : memref<2x4x256xf32, #tpu.memory_space<vmem>>, vector<1x4x256xf32>
    %255 = vector.shape_cast %254 : vector<1x4x256xf32> to vector<4x256xf32>
    %256 = vector.shape_cast %253 : vector<4x256xf32> to vector<1x4x256xf32>
    tpu.vector_store %arg4[%c0_159, %c0_160, %c0_161], %256 {strides = array<i32>} : memref<2x4x256xf32, #tpu.memory_space<vmem>>, vector<1x4x256xf32>,
    %257 = vector.extract_strided_slice %252 {offsets = [0, 256], sizes = [4, 256], strides = [1, 1]} : vector<4x512xf32> to vector<4x256xf32>
    %c1_162 = arith.constant 1 : index
    %c0_163 = arith.constant 0 : index
    %c0_164 = arith.constant 0 : index
    %258 = vector.load %arg4[%c1_162, %c0_163, %c0_164] : memref<2x4x256xf32, #tpu.memory_space<vmem>>, vector<1x4x256xf32>
    %259 = vector.shape_cast %258 : vector<1x4x256xf32> to vector<4x256xf32>
    %260 = vector.shape_cast %257 : vector<4x256xf32> to vector<1x4x256xf32>
    tpu.vector_store %arg4[%c1_162, %c0_163, %c0_164], %260 {strides = array<i32>} : memref<2x4x256xf32, #tpu.memory_space<vmem>>, vector<1x4x256xf32>,
    return
  }
  func.func @transform_0(%arg0: i32) -> (i32, i32, i32) {
    %c0_i32 = arith.constant 0 : i32
    %c0_i32_0 = arith.constant 0 : i32
    %c0_i32_1 = arith.constant 0 : i32
    return %arg0, %c0_i32, %c0_i32_0 : i32, i32, i32
  }
  func.func @transform_1(%arg0: i32) -> (i32, i32, i32) {
    %c0_i32 = arith.constant 0 : i32
    %c0_i32_0 = arith.constant 0 : i32
    %c0_i32_1 = arith.constant 0 : i32
    return %arg0, %c0_i32, %c0_i32_0 : i32, i32, i32
  }
  func.func @transform_2(%arg0: i32) -> (i32, i32) {
    %c0_i32 = arith.constant 0 : i32
    %c0_i32_0 = arith.constant 0 : i32
    %c0_i32_1 = arith.constant 0 : i32
    return %c0_i32, %c0_i32_0 : i32, i32
  }
  func.func @transform_3(%arg0: i32) -> (i32, i32, i32) {
    %c0_i32 = arith.constant 0 : i32
    %c0_i32_0 = arith.constant 0 : i32
    %c0_i32_1 = arith.constant 0 : i32
    return %arg0, %c0_i32, %c0_i32_0 : i32, i32, i32
  }
}

</mosaic_0001>

<llo_original>
// kernel: reverse.3
$region0: #{reverse.3}
  %s0 = inlined_call_operand.vmem [shape: f32[15,16], index: 0, kind: input, shape index: {}]
  %s1 = inlined_call_operand.vmem [shape: f32[15,16], index: 1, kind: output, shape index: {}]
  %v2 = vlaneseq
  %v3 = vsub.s32 14, %v2
  %4 = vset.pattern.permute.xlu0 %v3
  $region1: #{reverse.3} parent=0
    #allocation0 [shape = 'u8[8192]{0}', space=vmem, size = 0x2000, scoped, tag = 'operand span for operand 0']
    #allocation1 [shape = 'u8[8192]{0}', space=vmem, size = 0x2000, scoped, tag = 'operand span for operand 1']
    // Predicated region
    $region2: #{reverse.3} parent=1 // pred_check
      _
    $region3: #{reverse.3} parent=1 // pred_check_branch
      %6 = sbr.rel (0) target = $region5
    $region4: #{reverse.3} parent=1 // pred_region
      // Predicated region
      $region6: #{reverse.3} parent=4 // pred_check
        _
      $region7: #{reverse.3} parent=4 // pred_check_branch
        %8 = sbr.rel (0) target = $region9
      $region8: #{reverse.3} parent=4 // pred_region
        // Predicated region
        $region21: #{reverse.3} parent=8 // pred_check
          _
        $region22: #{reverse.3} parent=8 // pred_check_branch
          %26 = sbr.rel (0) target = $region24
        $region23: #{reverse.3} parent=8 // pred_region
          loop: start=0, step=1, limit=1
          $region25: #{reverse.3} parent=23 // loop_pre_header
            _
          $region26: #{reverse.3} parent=23 // loop_header
            %s28 = sphi 0, %s32
            %p29 = scmp.ge.s32.totalorder %s28, 1
            %s33 = sphi %s0, %s0
            %s34 = sphi [#allocation0], [#allocation0]
          $region27: #{reverse.3} parent=23 // loop_header_branch
            %31 = sbr.rel (%p29) target = $region31
          $region28: #{reverse.3} parent=23 // loop_body
            %v35 = vld [vmem:[%s33] sm:$0xff]
            %36 = vst [vmem:[%s34] sm:$0xff] %v35
            %v37 = vld [vmem:[%s33 + $0x8] sm:$0xff]
            %38 = vst [vmem:[%s34 + $0x8] sm:$0xff] %v37
          $region29: #{reverse.3} parent=23 // loop_footer
            %s32 = sadd.s32 1, %s28
          $region30: #{reverse.3} parent=23 // loop_footer_branch
            %27 = sbr.rel target = $region26
          $region31: #{reverse.3} parent=23 // loop_exit
            _
        $region24: #{reverse.3} parent=8 // pred_fallthru
          _
        // Predicated region
        $region32: #{reverse.3} parent=8 // pred_check
          _
        $region33: #{reverse.3} parent=8 // pred_check_branch
          %40 = sbr.rel target = $region35
        $region34: #{reverse.3} parent=8 // pred_region
          _
        $region35: #{reverse.3} parent=8 // pred_fallthru
          _
      $region9: #{reverse.3} parent=4 // pred_fallthru
        _
      // Predicated region
      $region10: #{reverse.3} parent=4 // pred_check
        _
      $region11: #{reverse.3} parent=4 // pred_check_branch
        %10 = sbr.rel target = $region13
      $region12: #{reverse.3} parent=4 // pred_region
        %s12 = ssub.s32 256, 1
        loop: start=0, step=1, limit=1
        $region14: #{reverse.3} parent=12 // loop_pre_header
          _
        $region15: #{reverse.3} parent=12 // loop_header
          %s14 = sphi 0, %s18
          %p15 = scmp.ge.s32.totalorder %s14, 1
          %s19 = sphi %s0, %s0
          %s20 = sphi [#allocation0], [#allocation0]
        $region16: #{reverse.3} parent=12 // loop_header_branch
          %17 = sbr.rel (%p15) target = $region20
        $region17: #{reverse.3} parent=12 // loop_body
          %v21 = vld [vmem:[%s19] sm:%s12]
          %22 = vst [vmem:[%s20] sm:%s12] %v21
          %v23 = vld [vmem:[%s19 + $0x8] sm:%s12]
          %24 = vst [vmem:[%s20 + $0x8] sm:%s12] %v23
        $region18: #{reverse.3} parent=12 // loop_footer
          %s18 = sadd.s32 1, %s14
        $region19: #{reverse.3} parent=12 // loop_footer_branch
          %13 = sbr.rel target = $region15
        $region20: #{reverse.3} parent=12 // loop_exit
          _
      $region13: #{reverse.3} parent=4 // pred_fallthru
        _
    $region5: #{reverse.3} parent=1 // pred_fallthru
      _
    %41 = vnop
    %s42 = scalar_lea.vmem [#allocation0], 8
    %s43 = scalar_lea.vmem %s42, 7 [#allocation0]
    %v44 = vld [vmem:[%s43] ss:$-1 sm:$0xff]
    %45 = vperm.xlu0 %4, %v44
    %v46 = vpop.permute.xlu0 %45
    %47 = vst [vmem:[#allocation1] sm:$0xff] %v46
    %s48 = scalar_lea.vmem [#allocation1], 8
    %s49 = scalar_lea.vmem [#allocation0], 7
    %v50 = vld [vmem:[%s49] ss:$-1 sm:$0xff]
    %51 = vperm.xlu0 %4, %v50
    %v52 = vpop.permute.xlu0 %51
    %53 = vst [vmem:[%s48] sm:$0xff] %v52
    // Predicated region
    $region36: #{reverse.3} parent=1 // pred_check
      _
    $region37: #{reverse.3} parent=1 // pred_check_branch
      %55 = sbr.rel (0) target = $region39
    $region38: #{reverse.3} parent=1 // pred_region
      // Predicated region
      $region40: #{reverse.3} parent=38 // pred_check
        _
      $region41: #{reverse.3} parent=38 // pred_check_branch
        %57 = sbr.rel (0) target = $region43
      $region42: #{reverse.3} parent=38 // pred_region
        // Predicated region
        $region55: #{reverse.3} parent=42 // pred_check
          _
        $region56: #{reverse.3} parent=42 // pred_check_branch
          %75 = sbr.rel (0) target = $region58
        $region57: #{reverse.3} parent=42 // pred_region
          loop: start=0, step=1, limit=1
          $region59: #{reverse.3} parent=57 // loop_pre_header
            _
          $region60: #{reverse.3} parent=57 // loop_header
            %s77 = sphi 0, %s81
            %p78 = scmp.ge.s32.totalorder %s77, 1
            %s82 = sphi [#allocation1], [#allocation1]
            %s83 = sphi %s1, %s1
          $region61: #{reverse.3} parent=57 // loop_header_branch
            %80 = sbr.rel (%p78) target = $region65
          $region62: #{reverse.3} parent=57 // loop_body
            %v84 = vld [vmem:[%s82] sm:$0xff]
            %85 = vst [vmem:[%s83] sm:$0xff] %v84
            %v86 = vld [vmem:[%s82 + $0x8] sm:$0xff]
            %87 = vst [vmem:[%s83 + $0x8] sm:$0xff] %v86
          $region63: #{reverse.3} parent=57 // loop_footer
            %s81 = sadd.s32 1, %s77
          $region64: #{reverse.3} parent=57 // loop_footer_branch
            %76 = sbr.rel target = $region60
          $region65: #{reverse.3} parent=57 // loop_exit
            _
        $region58: #{reverse.3} parent=42 // pred_fallthru
          _
        // Predicated region
        $region66: #{reverse.3} parent=42 // pred_check
          _
        $region67: #{reverse.3} parent=42 // pred_check_branch
          %89 = sbr.rel target = $region69
        $region68: #{reverse.3} parent=42 // pred_region
          _
        $region69: #{reverse.3} parent=42 // pred_fallthru
          _
      $region43: #{reverse.3} parent=38 // pred_fallthru
        _
      // Predicated region
      $region44: #{reverse.3} parent=38 // pred_check
        _
      $region45: #{reverse.3} parent=38 // pred_check_branch
        %59 = sbr.rel target = $region47
      $region46: #{reverse.3} parent=38 // pred_region
        %s61 = ssub.s32 256, 1
        loop: start=0, step=1, limit=1
        $region48: #{reverse.3} parent=46 // loop_pre_header
          _
        $region49: #{reverse.3} parent=46 // loop_header
          %s63 = sphi 0, %s67
          %p64 = scmp.ge.s32.totalorder %s63, 1
          %s68 = sphi [#allocation1], [#allocation1]
          %s69 = sphi %s1, %s1
        $region50: #{reverse.3} parent=46 // loop_header_branch
          %66 = sbr.rel (%p64) target = $region54
        $region51: #{reverse.3} parent=46 // loop_body
          %v70 = vld [vmem:[%s68] sm:%s61]
          %71 = vst [vmem:[%s69] sm:%s61] %v70
          %v72 = vld [vmem:[%s68 + $0x8] sm:%s61]
          %73 = vst [vmem:[%s69 + $0x8] sm:%s61] %v72
        $region52: #{reverse.3} parent=46 // loop_footer
          %s67 = sadd.s32 1, %s63
        $region53: #{reverse.3} parent=46 // loop_footer_branch
          %62 = sbr.rel target = $region49
        $region54: #{reverse.3} parent=46 // loop_exit
          _
      $region47: #{reverse.3} parent=38 // pred_fallthru
        _
    $region39: #{reverse.3} parent=1 // pred_fallthru
      _
    %90 = vnop

// kernel: reverse.2
$region0: #{reverse.2}
  %s0 = inlined_call_operand.vmem [shape: f32[1,16], index: 0, kind: input, shape index: {}]
  %s1 = inlined_call_operand.vmem [shape: f32[1,16], index: 1, kind: output, shape index: {}]
  %v2 = vlaneseq
  %v3 = vsub.s32 0, %v2
  %4 = vset.pattern.permute.xlu0 %v3
  $region1: #{reverse.2} parent=0
    #allocation0 [shape = 'u8[8192]{0}', space=vmem, size = 0x2000, scoped, tag = 'operand span for operand 0']
    #allocation1 [shape = 'u8[8192]{0}', space=vmem, size = 0x2000, scoped, tag = 'operand span for operand 1']
    // Predicated region
    $region2: #{reverse.2} parent=1 // pred_check
      _
    $region3: #{reverse.2} parent=1 // pred_check_branch
      %6 = sbr.rel (0) target = $region5
    $region4: #{reverse.2} parent=1 // pred_region
      // Predicated region
      $region6: #{reverse.2} parent=4 // pred_check
        _
      $region7: #{reverse.2} parent=4 // pred_check_branch
        %8 = sbr.rel (0) target = $region9
      $region8: #{reverse.2} parent=4 // pred_region
        // Predicated region
        $region21: #{reverse.2} parent=8 // pred_check
          _
        $region22: #{reverse.2} parent=8 // pred_check_branch
          %26 = sbr.rel (0) target = $region24
        $region23: #{reverse.2} parent=8 // pred_region
          loop: start=0, step=1, limit=1
          $region25: #{reverse.2} parent=23 // loop_pre_header
            _
          $region26: #{reverse.2} parent=23 // loop_header
            %s28 = sphi 0, %s32
            %p29 = scmp.ge.s32.totalorder %s28, 1
            %s33 = sphi %s0, %s0
            %s34 = sphi [#allocation0], [#allocation0]
          $region27: #{reverse.2} parent=23 // loop_header_branch
            %31 = sbr.rel (%p29) target = $region31
          $region28: #{reverse.2} parent=23 // loop_body
            %v35 = vld [vmem:[%s33] sm:$0xff]
            %36 = vst [vmem:[%s34] sm:$0xff] %v35
            %v37 = vld [vmem:[%s33 + $0x8] sm:$0xff]
            %38 = vst [vmem:[%s34 + $0x8] sm:$0xff] %v37
          $region29: #{reverse.2} parent=23 // loop_footer
            %s32 = sadd.s32 1, %s28
          $region30: #{reverse.2} parent=23 // loop_footer_branch
            %27 = sbr.rel target = $region26
          $region31: #{reverse.2} parent=23 // loop_exit
            _
        $region24: #{reverse.2} parent=8 // pred_fallthru
          _
        // Predicated region
        $region32: #{reverse.2} parent=8 // pred_check
          _
        $region33: #{reverse.2} parent=8 // pred_check_branch
          %40 = sbr.rel target = $region35
        $region34: #{reverse.2} parent=8 // pred_region
          _
        $region35: #{reverse.2} parent=8 // pred_fallthru
          _
      $region9: #{reverse.2} parent=4 // pred_fallthru
        _
      // Predicated region
      $region10: #{reverse.2} parent=4 // pred_check
        _
      $region11: #{reverse.2} parent=4 // pred_check_branch
        %10 = sbr.rel target = $region13
      $region12: #{reverse.2} parent=4 // pred_region
        %s12 = ssub.s32 256, 1
        loop: start=0, step=1, limit=1
        $region14: #{reverse.2} parent=12 // loop_pre_header
          _
        $region15: #{reverse.2} parent=12 // loop_header
          %s14 = sphi 0, %s18
          %p15 = scmp.ge.s32.totalorder %s14, 1
          %s19 = sphi %s0, %s0
          %s20 = sphi [#allocation0], [#allocation0]
        $region16: #{reverse.2} parent=12 // loop_header_branch
          %17 = sbr.rel (%p15) target = $region20
        $region17: #{reverse.2} parent=12 // loop_body
          %v21 = vld [vmem:[%s19] sm:%s12]
          %22 = vst [vmem:[%s20] sm:%s12] %v21
          %v23 = vld [vmem:[%s19 + $0x8] sm:%s12]
          %24 = vst [vmem:[%s20 + $0x8] sm:%s12] %v23
        $region18: #{reverse.2} parent=12 // loop_footer
          %s18 = sadd.s32 1, %s14
        $region19: #{reverse.2} parent=12 // loop_footer_branch
          %13 = sbr.rel target = $region15
        $region20: #{reverse.2} parent=12 // loop_exit
          _
      $region13: #{reverse.2} parent=4 // pred_fallthru
        _
    $region5: #{reverse.2} parent=1 // pred_fallthru
      _
    %41 = vnop
    %s42 = scalar_lea.vmem [#allocation0], 8
    %s43 = scalar_lea.vmem %s42, 7 [#allocation0]
    %v44 = vld [vmem:[%s43] ss:$-1 sm:$0xff]
    %45 = vperm.xlu0 %4, %v44
    %v46 = vpop.permute.xlu0 %45
    %47 = vst [vmem:[#allocation1] sm:$0xff] %v46
    %s48 = scalar_lea.vmem [#allocation1], 8
    %s49 = scalar_lea.vmem [#allocation0], 7
    %v50 = vld [vmem:[%s49] ss:$-1 sm:$0xff]
    %51 = vperm.xlu0 %4, %v50
    %v52 = vpop.permute.xlu0 %51
    %53 = vst [vmem:[%s48] sm:$0xff] %v52
    // Predicated region
    $region36: #{reverse.2} parent=1 // pred_check
      _
    $region37: #{reverse.2} parent=1 // pred_check_branch
      %55 = sbr.rel (0) target = $region39
    $region38: #{reverse.2} parent=1 // pred_region
      // Predicated region
      $region40: #{reverse.2} parent=38 // pred_check
        _
      $region41: #{reverse.2} parent=38 // pred_check_branch
        %57 = sbr.rel (0) target = $region43
      $region42: #{reverse.2} parent=38 // pred_region
        // Predicated region
        $region55: #{reverse.2} parent=42 // pred_check
          _
        $region56: #{reverse.2} parent=42 // pred_check_branch
          %75 = sbr.rel (0) target = $region58
        $region57: #{reverse.2} parent=42 // pred_region
          loop: start=0, step=1, limit=1
          $region59: #{reverse.2} parent=57 // loop_pre_header
            _
          $region60: #{reverse.2} parent=57 // loop_header
            %s77 = sphi 0, %s81
            %p78 = scmp.ge.s32.totalorder %s77, 1
            %s82 = sphi [#allocation1], [#allocation1]
            %s83 = sphi %s1, %s1
          $region61: #{reverse.2} parent=57 // loop_header_branch
            %80 = sbr.rel (%p78) target = $region65
          $region62: #{reverse.2} parent=57 // loop_body
            %v84 = vld [vmem:[%s82] sm:$0xff]
            %85 = vst [vmem:[%s83] sm:$0xff] %v84
            %v86 = vld [vmem:[%s82 + $0x8] sm:$0xff]
            %87 = vst [vmem:[%s83 + $0x8] sm:$0xff] %v86
          $region63: #{reverse.2} parent=57 // loop_footer
            %s81 = sadd.s32 1, %s77
          $region64: #{reverse.2} parent=57 // loop_footer_branch
            %76 = sbr.rel target = $region60
          $region65: #{reverse.2} parent=57 // loop_exit
            _
        $region58: #{reverse.2} parent=42 // pred_fallthru
          _
        // Predicated region
        $region66: #{reverse.2} parent=42 // pred_check
          _
        $region67: #{reverse.2} parent=42 // pred_check_branch
          %89 = sbr.rel target = $region69
        $region68: #{reverse.2} parent=42 // pred_region
          _
        $region69: #{reverse.2} parent=42 // pred_fallthru
          _
      $region43: #{reverse.2} parent=38 // pred_fallthru
        _
      // Predicated region
      $region44: #{reverse.2} parent=38 // pred_check
        _
      $region45: #{reverse.2} parent=38 // pred_check_branch
        %59 = sbr.rel target = $region47
      $region46: #{reverse.2} parent=38 // pred_region
        %s61 = ssub.s32 256, 1
        loop: start=0, step=1, limit=1
        $region48: #{reverse.2} parent=46 // loop_pre_header
          _
        $region49: #{reverse.2} parent=46 // loop_header
          %s63 = sphi 0, %s67
          %p64 = scmp.ge.s32.totalorder %s63, 1
          %s68 = sphi [#allocation1], [#allocation1]
          %s69 = sphi %s1, %s1
        $region50: #{reverse.2} parent=46 // loop_header_branch
          %66 = sbr.rel (%p64) target = $region54
        $region51: #{reverse.2} parent=46 // loop_body
          %v70 = vld [vmem:[%s68] sm:%s61]
          %71 = vst [vmem:[%s69] sm:%s61] %v70
          %v72 = vld [vmem:[%s68 + $0x8] sm:%s61]
          %73 = vst [vmem:[%s69 + $0x8] sm:%s61] %v72
        $region52: #{reverse.2} parent=46 // loop_footer
          %s67 = sadd.s32 1, %s63
        $region53: #{reverse.2} parent=46 // loop_footer_branch
          %62 = sbr.rel target = $region49
        $region54: #{reverse.2} parent=46 // loop_exit
          _
      $region47: #{reverse.2} parent=38 // pred_fallthru
        _
    $region39: #{reverse.2} parent=1 // pred_fallthru
      _
    %90 = vnop

// kernel: reverse.0
$region0: #{reverse.0}
  %s0 = inlined_call_operand.vmem [shape: f32[2,4,16,7], index: 0, kind: input, shape index: {}]
  %s1 = inlined_call_operand.vmem [shape: f32[2,4,16,7], index: 1, kind: output, shape index: {}]
  $region1: #{reverse.0} parent=0
    #allocation0 [shape = 'u8[65536]{0}', space=vmem, size = 0x10000, scoped, tag = 'operand span for operand 0']
    #allocation1 [shape = 'u8[32768]{0}', space=vmem, size = 0x8000, scoped, tag = 'operand span for operand 1']
    %s2 = scalar_lea.vmem [#allocation0], 8
    // Predicated region
    $region2: #{reverse.0} parent=1 // pred_check
      _
    $region3: #{reverse.0} parent=1 // pred_check_branch
      %4 = sbr.rel (0) target = $region5
    $region4: #{reverse.0} parent=1 // pred_region
      // Predicated region
      $region6: #{reverse.0} parent=4 // pred_check
        _
      $region7: #{reverse.0} parent=4 // pred_check_branch
        %6 = sbr.rel (0) target = $region9
      $region8: #{reverse.0} parent=4 // pred_region
        // Predicated region
        $region21: #{reverse.0} parent=8 // pred_check
          _
        $region22: #{reverse.0} parent=8 // pred_check_branch
          %36 = sbr.rel (0) target = $region24
        $region23: #{reverse.0} parent=8 // pred_region
          loop: start=0, step=1, limit=1
          $region25: #{reverse.0} parent=23 // loop_pre_header
            _
          $region26: #{reverse.0} parent=23 // loop_header
            %s38 = sphi 0, %s42
            %p39 = scmp.ge.s32.totalorder %s38, 1
            %s43 = sphi %s0, %s0
            %s44 = sphi %s2, %s2
          $region27: #{reverse.0} parent=23 // loop_header_branch
            %41 = sbr.rel (%p39) target = $region31
          $region28: #{reverse.0} parent=23 // loop_body
            %v45 = vld [vmem:[%s43] sm:$0xff]
            %46 = vst [vmem:[%s44] sm:$0xff] %v45
            %v47 = vld [vmem:[%s43 + $0x8] sm:$0xff]
            %48 = vst [vmem:[%s44 + $0x10] sm:$0xff] %v47
            %v49 = vld [vmem:[%s43 + $0x10] sm:$0xff]
            %50 = vst [vmem:[%s44 + $0x20] sm:$0xff] %v49
            %v51 = vld [vmem:[%s43 + $0x18] sm:$0xff]
            %52 = vst [vmem:[%s44 + $0x30] sm:$0xff] %v51
            %v53 = vld [vmem:[%s43 + $0x20] sm:$0xff]
            %54 = vst [vmem:[%s44 + $0x40] sm:$0xff] %v53
            %v55 = vld [vmem:[%s43 + $0x28] sm:$0xff]
            %56 = vst [vmem:[%s44 + $0x50] sm:$0xff] %v55
            %v57 = vld [vmem:[%s43 + $0x30] sm:$0xff]
            %58 = vst [vmem:[%s44 + $0x60] sm:$0xff] %v57
            %v59 = vld [vmem:[%s43 + $0x38] sm:$0xff]
            %60 = vst [vmem:[%s44 + $0x70] sm:$0xff] %v59
          $region29: #{reverse.0} parent=23 // loop_footer
            %s42 = sadd.s32 1, %s38
          $region30: #{reverse.0} parent=23 // loop_footer_branch
            %37 = sbr.rel target = $region26
          $region31: #{reverse.0} parent=23 // loop_exit
            _
        $region24: #{reverse.0} parent=8 // pred_fallthru
          _
        // Predicated region
        $region32: #{reverse.0} parent=8 // pred_check
          _
        $region33: #{reverse.0} parent=8 // pred_check_branch
          %62 = sbr.rel target = $region35
        $region34: #{reverse.0} parent=8 // pred_region
          _
        $region35: #{reverse.0} parent=8 // pred_fallthru
          _
      $region9: #{reverse.0} parent=4 // pred_fallthru
        _
      // Predicated region
      $region10: #{reverse.0} parent=4 // pred_check
        _
      $region11: #{reverse.0} parent=4 // pred_check_branch
        %8 = sbr.rel target = $region13
      $region12: #{reverse.0} parent=4 // pred_region
        %s10 = ssub.s32 256, 1
        loop: start=0, step=1, limit=1
        $region14: #{reverse.0} parent=12 // loop_pre_header
          _
        $region15: #{reverse.0} parent=12 // loop_header
          %s12 = sphi 0, %s16
          %p13 = scmp.ge.s32.totalorder %s12, 1
          %s17 = sphi %s0, %s0
          %s18 = sphi %s2, %s2
        $region16: #{reverse.0} parent=12 // loop_header_branch
          %15 = sbr.rel (%p13) target = $region20
        $region17: #{reverse.0} parent=12 // loop_body
          %v19 = vld [vmem:[%s17] sm:%s10]
          %20 = vst [vmem:[%s18] sm:%s10] %v19
          %v21 = vld [vmem:[%s17 + $0x8] sm:%s10]
          %22 = vst [vmem:[%s18 + $0x10] sm:%s10] %v21
          %v23 = vld [vmem:[%s17 + $0x10] sm:%s10]
          %24 = vst [vmem:[%s18 + $0x20] sm:%s10] %v23
          %v25 = vld [vmem:[%s17 + $0x18] sm:%s10]
          %26 = vst [vmem:[%s18 + $0x30] sm:%s10] %v25
          %v27 = vld [vmem:[%s17 + $0x20] sm:%s10]
          %28 = vst [vmem:[%s18 + $0x40] sm:%s10] %v27
          %v29 = vld [vmem:[%s17 + $0x28] sm:%s10]
          %30 = vst [vmem:[%s18 + $0x50] sm:%s10] %v29
          %v31 = vld [vmem:[%s17 + $0x30] sm:%s10]
          %32 = vst [vmem:[%s18 + $0x60] sm:%s10] %v31
          %v33 = vld [vmem:[%s17 + $0x38] sm:%s10]
          %34 = vst [vmem:[%s18 + $0x70] sm:%s10] %v33
        $region18: #{reverse.0} parent=12 // loop_footer
          %s16 = sadd.s32 1, %s12
        $region19: #{reverse.0} parent=12 // loop_footer_branch
          %11 = sbr.rel target = $region15
        $region20: #{reverse.0} parent=12 // loop_exit
          _
      $region13: #{reverse.0} parent=4 // pred_fallthru
        _
    $region5: #{reverse.0} parent=1 // pred_fallthru
      _
    %63 = vnop
    %s64 = scalar_lea.vmem [#allocation0], 7
    %v65 = vld [vmem:[%s64] ss:$-1 sm:$0xff]
    %v66 = vrot.slane %v65, 1
    %67 = vst [vmem:[#allocation1] sm:$0xff] %v66
    %s68 = scalar_lea.vmem [#allocation0], 8
    %s69 = scalar_lea.vmem %s68, 7 [#allocation0]
    %v70 = vld [vmem:[%s69] ss:$-1 sm:$0xff]
    %v71 = vrot.slane %v70, 1
    %v72 = vlaneseq
    %v73 = vshrl.u32 %v72, 7
    %vm74 = vcmp.lt.s32.totalorder %v73, 7
    %75 = vst.msk [vmem:[#allocation1] sm:$0xff] %vm74, %v71
    %s76 = scalar_lea.vmem [#allocation1], 8
    %s77 = scalar_lea.vmem [#allocation0], 16
    %s78 = scalar_lea.vmem %s77, 7 [#allocation0]
    %v79 = vld [vmem:[%s78] ss:$-1 sm:$0xff]
    %v80 = vrot.slane %v79, 1
    %81 = vst [vmem:[%s76] sm:$0xff] %v80
    %s82 = scalar_lea.vmem %s77, 8 [#allocation0]
    %s83 = scalar_lea.vmem %s82, 7 [#allocation0]
    %v84 = vld [vmem:[%s83] ss:$-1 sm:$0xff]
    %v85 = vrot.slane %v84, 1
    %v86 = vlaneseq
    %v87 = vshrl.u32 %v86, 7
    %vm88 = vcmp.lt.s32.totalorder %v87, 7
    %89 = vst.msk [vmem:[%s76] sm:$0xff] %vm88, %v85
    %s90 = scalar_lea.vmem [#allocation1], 16
    %s91 = scalar_lea.vmem [#allocation0], 32
    %s92 = scalar_lea.vmem %s91, 7 [#allocation0]
    %v93 = vld [vmem:[%s92] ss:$-1 sm:$0xff]
    %v94 = vrot.slane %v93, 1
    %95 = vst [vmem:[%s90] sm:$0xff] %v94
    %s96 = scalar_lea.vmem %s91, 8 [#allocation0]
    %s97 = scalar_lea.vmem %s96, 7 [#allocation0]
    %v98 = vld [vmem:[%s97] ss:$-1 sm:$0xff]
    %v99 = vrot.slane %v98, 1
    %v100 = vlaneseq
    %v101 = vshrl.u32 %v100, 7
    %vm102 = vcmp.lt.s32.totalorder %v101, 7
    %103 = vst.msk [vmem:[%s90] sm:$0xff] %vm102, %v99
    %s104 = scalar_lea.vmem [#allocation1], 24
    %s105 = scalar_lea.vmem [#allocation0], 48
    %s106 = scalar_lea.vmem %s105, 7 [#allocation0]
    %v107 = vld [vmem:[%s106] ss:$-1 sm:$0xff]
    %v108 = vrot.slane %v107, 1
    %109 = vst [vmem:[%s104] sm:$0xff] %v108
    %s110 = scalar_lea.vmem %s105, 8 [#allocation0]
    %s111 = scalar_lea.vmem %s110, 7 [#allocation0]
    %v112 = vld [vmem:[%s111] ss:$-1 sm:$0xff]
    %v113 = vrot.slane %v112, 1
    %v114 = vlaneseq
    %v115 = vshrl.u32 %v114, 7
    %vm116 = vcmp.lt.s32.totalorder %v115, 7
    %117 = vst.msk [vmem:[%s104] sm:$0xff] %vm116, %v113
    %s118 = scalar_lea.vmem [#allocation1], 32
    %s119 = scalar_lea.vmem [#allocation0], 64
    %s120 = scalar_lea.vmem %s119, 7 [#allocation0]
    %v121 = vld [vmem:[%s120] ss:$-1 sm:$0xff]
    %v122 = vrot.slane %v121, 1
    %123 = vst [vmem:[%s118] sm:$0xff] %v122
    %s124 = scalar_lea.vmem %s119, 8 [#allocation0]
    %s125 = scalar_lea.vmem %s124, 7 [#allocation0]
    %v126 = vld [vmem:[%s125] ss:$-1 sm:$0xff]
    %v127 = vrot.slane %v126, 1
    %v128 = vlaneseq
    %v129 = vshrl.u32 %v128, 7
    %vm130 = vcmp.lt.s32.totalorder %v129, 7
    %131 = vst.msk [vmem:[%s118] sm:$0xff] %vm130, %v127
    %s132 = scalar_lea.vmem [#allocation1], 40
    %s133 = scalar_lea.vmem [#allocation0], 80
    %s134 = scalar_lea.vmem %s133, 7 [#allocation0]
    %v135 = vld [vmem:[%s134] ss:$-1 sm:$0xff]
    %v136 = vrot.slane %v135, 1
    %137 = vst [vmem:[%s132] sm:$0xff] %v136
    %s138 = scalar_lea.vmem %s133, 8 [#allocation0]
    %s139 = scalar_lea.vmem %s138, 7 [#allocation0]
    %v140 = vld [vmem:[%s139] ss:$-1 sm:$0xff]
    %v141 = vrot.slane %v140, 1
    %v142 = vlaneseq
    %v143 = vshrl.u32 %v142, 7
    %vm144 = vcmp.lt.s32.totalorder %v143, 7
    %145 = vst.msk [vmem:[%s132] sm:$0xff] %vm144, %v141
    %s146 = scalar_lea.vmem [#allocation1], 48
    %s147 = scalar_lea.vmem [#allocation0], 96
    %s148 = scalar_lea.vmem %s147, 7 [#allocation0]
    %v149 = vld [vmem:[%s148] ss:$-1 sm:$0xff]
    %v150 = vrot.slane %v149, 1
    %151 = vst [vmem:[%s146] sm:$0xff] %v150
    %s152 = scalar_lea.vmem %s147, 8 [#allocation0]
    %s153 = scalar_lea.vmem %s152, 7 [#allocation0]
    %v154 = vld [vmem:[%s153] ss:$-1 sm:$0xff]
    %v155 = vrot.slane %v154, 1
    %v156 = vlaneseq
    %v157 = vshrl.u32 %v156, 7
    %vm158 = vcmp.lt.s32.totalorder %v157, 7
    %159 = vst.msk [vmem:[%s146] sm:$0xff] %vm158, %v155
    %s160 = scalar_lea.vmem [#allocation1], 56
    %s161 = scalar_lea.vmem [#allocation0], 112
    %s162 = scalar_lea.vmem %s161, 7 [#allocation0]
    %v163 = vld [vmem:[%s162] ss:$-1 sm:$0xff]
    %v164 = vrot.slane %v163, 1
    %165 = vst [vmem:[%s160] sm:$0xff] %v164
    %s166 = scalar_lea.vmem %s161, 8 [#allocation0]
    %s167 = scalar_lea.vmem %s166, 7 [#allocation0]
    %v168 = vld [vmem:[%s167] ss:$-1 sm:$0xff]
    %v169 = vrot.slane %v168, 1
    %v170 = vlaneseq
    %v171 = vshrl.u32 %v170, 7
    %vm172 = vcmp.lt.s32.totalorder %v171, 7
    %173 = vst.msk [vmem:[%s160] sm:$0xff] %vm172, %v169
    // Predicated region
    $region36: #{reverse.0} parent=1 // pred_check
      _
    $region37: #{reverse.0} parent=1 // pred_check_branch
      %175 = sbr.rel (0) target = $region39
    $region38: #{reverse.0} parent=1 // pred_region
      // Predicated region
      $region40: #{reverse.0} parent=38 // pred_check
        _
      $region41: #{reverse.0} parent=38 // pred_check_branch
        %177 = sbr.rel (0) target = $region43
      $region42: #{reverse.0} parent=38 // pred_region
        // Predicated region
        $region55: #{reverse.0} parent=42 // pred_check
          _
        $region56: #{reverse.0} parent=42 // pred_check_branch
          %207 = sbr.rel (0) target = $region58
        $region57: #{reverse.0} parent=42 // pred_region
          loop: start=0, step=1, limit=1
          $region59: #{reverse.0} parent=57 // loop_pre_header
            _
          $region60: #{reverse.0} parent=57 // loop_header
            %s209 = sphi 0, %s213
            %p210 = scmp.ge.s32.totalorder %s209, 1
            %s214 = sphi [#allocation1], [#allocation1]
            %s215 = sphi %s1, %s1
          $region61: #{reverse.0} parent=57 // loop_header_branch
            %212 = sbr.rel (%p210) target = $region65
          $region62: #{reverse.0} parent=57 // loop_body
            %v216 = vld [vmem:[%s214] sm:$0xff]
            %217 = vst [vmem:[%s215] sm:$0xff] %v216
            %v218 = vld [vmem:[%s214 + $0x8] sm:$0xff]
            %219 = vst [vmem:[%s215 + $0x8] sm:$0xff] %v218
            %v220 = vld [vmem:[%s214 + $0x10] sm:$0xff]
            %221 = vst [vmem:[%s215 + $0x10] sm:$0xff] %v220
            %v222 = vld [vmem:[%s214 + $0x18] sm:$0xff]
            %223 = vst [vmem:[%s215 + $0x18] sm:$0xff] %v222
            %v224 = vld [vmem:[%s214 + $0x20] sm:$0xff]
            %225 = vst [vmem:[%s215 + $0x20] sm:$0xff] %v224
            %v226 = vld [vmem:[%s214 + $0x28] sm:$0xff]
            %227 = vst [vmem:[%s215 + $0x28] sm:$0xff] %v226
            %v228 = vld [vmem:[%s214 + $0x30] sm:$0xff]
            %229 = vst [vmem:[%s215 + $0x30] sm:$0xff] %v228
            %v230 = vld [vmem:[%s214 + $0x38] sm:$0xff]
            %231 = vst [vmem:[%s215 + $0x38] sm:$0xff] %v230
          $region63: #{reverse.0} parent=57 // loop_footer
            %s213 = sadd.s32 1, %s209
          $region64: #{reverse.0} parent=57 // loop_footer_branch
            %208 = sbr.rel target = $region60
          $region65: #{reverse.0} parent=57 // loop_exit
            _
        $region58: #{reverse.0} parent=42 // pred_fallthru
          _
        // Predicated region
        $region66: #{reverse.0} parent=42 // pred_check
          _
        $region67: #{reverse.0} parent=42 // pred_check_branch
          %233 = sbr.rel target = $region69
        $region68: #{reverse.0} parent=42 // pred_region
          _
        $region69: #{reverse.0} parent=42 // pred_fallthru
          _
      $region43: #{reverse.0} parent=38 // pred_fallthru
        _
      // Predicated region
      $region44: #{reverse.0} parent=38 // pred_check
        _
      $region45: #{reverse.0} parent=38 // pred_check_branch
        %179 = sbr.rel target = $region47
      $region46: #{reverse.0} parent=38 // pred_region
        %s181 = ssub.s32 256, 1
        loop: start=0, step=1, limit=1
        $region48: #{reverse.0} parent=46 // loop_pre_header
          _
        $region49: #{reverse.0} parent=46 // loop_header
          %s183 = sphi 0, %s187
          %p184 = scmp.ge.s32.totalorder %s183, 1
          %s188 = sphi [#allocation1], [#allocation1]
          %s189 = sphi %s1, %s1
        $region50: #{reverse.0} parent=46 // loop_header_branch
          %186 = sbr.rel (%p184) target = $region54
        $region51: #{reverse.0} parent=46 // loop_body
          %v190 = vld [vmem:[%s188] sm:%s181]
          %191 = vst [vmem:[%s189] sm:%s181] %v190
          %v192 = vld [vmem:[%s188 + $0x8] sm:%s181]
          %193 = vst [vmem:[%s189 + $0x8] sm:%s181] %v192
          %v194 = vld [vmem:[%s188 + $0x10] sm:%s181]
          %195 = vst [vmem:[%s189 + $0x10] sm:%s181] %v194
          %v196 = vld [vmem:[%s188 + $0x18] sm:%s181]
          %197 = vst [vmem:[%s189 + $0x18] sm:%s181] %v196
          %v198 = vld [vmem:[%s188 + $0x20] sm:%s181]
          %199 = vst [vmem:[%s189 + $0x20] sm:%s181] %v198
          %v200 = vld [vmem:[%s188 + $0x28] sm:%s181]
          %201 = vst [vmem:[%s189 + $0x28] sm:%s181] %v200
          %v202 = vld [vmem:[%s188 + $0x30] sm:%s181]
          %203 = vst [vmem:[%s189 + $0x30] sm:%s181] %v202
          %v204 = vld [vmem:[%s188 + $0x38] sm:%s181]
          %205 = vst [vmem:[%s189 + $0x38] sm:%s181] %v204
        $region52: #{reverse.0} parent=46 // loop_footer
          %s187 = sadd.s32 1, %s183
        $region53: #{reverse.0} parent=46 // loop_footer_branch
          %182 = sbr.rel target = $region49
        $region54: #{reverse.0} parent=46 // loop_exit
          _
      $region47: #{reverse.0} parent=38 // pred_fallthru
        _
    $region39: #{reverse.0} parent=1 // pred_fallthru
      _
    %234 = vnop

// kernel: triple_kernel_fourier_convolution.1
$region0: #{triple_kernel_fourier_convolution.1}
  #allocation0 [shape = 'u32[]', space=smem, size = 0x4, offset = 0x4, fixed_abs, tag = 'smem constant byte address 0x4 - core index']
  #allocation1 [shape = 'u32[72,128]{1,0:T(1,128)}', space=vmem, size = 0x9000, scoped, tag = 'internal scratch']
  #allocation2 [shape = 'f32[4,1024]{1,0:T(4,128)}', space=vmem, size = 0x4000, scoped, tag = 'scratch operand']
  #allocation3 [shape = 'f32[4,1024]{1,0:T(4,128)}', space=vmem, size = 0x4000, scoped, tag = 'scratch operand']
  #allocation4 [shape = 'f32[4,1024]{1,0:T(4,128)}', space=vmem, size = 0x4000, scoped, tag = 'scratch operand']
  %s0 = inlined_call_operand.vmem [shape: f32[2,4,256], index: 0, kind: input, shape index: {}]
  %s1 = inlined_call_operand.vmem [shape: f32[2,4,256], index: 1, kind: input, shape index: {}]
  %s2 = inlined_call_operand.vmem [shape: f32[12,109], index: 2, kind: input, shape index: {}]
  %s3 = inlined_call_operand.vmem [shape: f32[2,4,256], index: 3, kind: output, shape index: {}]
  %s4 = sld [smem:[#allocation0]]
  $region22: #{triple_kernel_fourier_convolution.1} parent=0
    _
  %s6 = ssub.s32 1, %s4
  %s7 = scalar_select 0, %s6, %s4
  // Predicated region
  $region2: #{triple_kernel_fourier_convolution.1} parent=0 // pred_check
    _
  $region3: #{triple_kernel_fourier_convolution.1} parent=0 // pred_check_branch
    %9 = sbr.rel (0) target = $region5
  $region4: #{triple_kernel_fourier_convolution.1} parent=0 // pred_region
    _
  $region5: #{triple_kernel_fourier_convolution.1} parent=0 // pred_fallthru
    _
  // Predicated region
  $region6: #{triple_kernel_fourier_convolution.1} parent=0 // pred_check
    _
  $region7: #{triple_kernel_fourier_convolution.1} parent=0 // pred_check_branch
    %11 = sbr.rel (0) target = $region9
  $region8: #{triple_kernel_fourier_convolution.1} parent=0 // pred_region
    _
  $region9: #{triple_kernel_fourier_convolution.1} parent=0 // pred_fallthru
    _
  // Predicated region
  $region10: #{triple_kernel_fourier_convolution.1} parent=0 // pred_check
    _
  $region11: #{triple_kernel_fourier_convolution.1} parent=0 // pred_check_branch
    %13 = sbr.rel (0) target = $region13
  $region12: #{triple_kernel_fourier_convolution.1} parent=0 // pred_region
    _
  $region13: #{triple_kernel_fourier_convolution.1} parent=0 // pred_fallthru
    _
  %v14 = vld [vmem:[%s0] sm:$0xff]
  %v15 = vld [vmem:[%s1] sm:$0xff]
  %v16 = vsub.f32 %v14, %v15
  %17 = vst [vmem:[#allocation2] sm:$0xf] 0.0
  %18 = vst [vmem:[#allocation2 + $0xc] sm:$0xf] 0.0
  %19 = vst [vmem:[#allocation2 + $0x4] sm:$0xff] %v14
  %20 = vst [vmem:[#allocation3] sm:$0xf] 0.0
  %21 = vst [vmem:[#allocation3 + $0xc] sm:$0xf] 0.0
  %22 = vst [vmem:[#allocation3 + $0x4] sm:$0xff] %v15
  %23 = vst [vmem:[#allocation4] sm:$0xf] 0.0
  %24 = vst [vmem:[#allocation4 + $0xc] sm:$0xf] 0.0
  %25 = vst [vmem:[#allocation4 + $0x4] sm:$0xff] %v16
  %s26 = scalar_lea.vmem %s0, 8
  %v27 = vld [vmem:[%s26] sm:$0xff]
  %s28 = scalar_lea.vmem %s1, 8
  %v29 = vld [vmem:[%s28] sm:$0xff]
  %v30 = vsub.f32 %v27, %v29
  %31 = vst [vmem:[#allocation2 + $0x10] sm:$0xf] 0.0
  %32 = vst [vmem:[#allocation2 + $0x1c] sm:$0xf] 0.0
  %33 = vst [vmem:[#allocation2 + $0x14] sm:$0xff] %v27
  %34 = vst [vmem:[#allocation3 + $0x10] sm:$0xf] 0.0
  %35 = vst [vmem:[#allocation3 + $0x1c] sm:$0xf] 0.0
  %36 = vst [vmem:[#allocation3 + $0x14] sm:$0xff] %v29
  %37 = vst [vmem:[#allocation4 + $0x10] sm:$0xf] 0.0
  %38 = vst [vmem:[#allocation4 + $0x1c] sm:$0xf] 0.0
  %39 = vst [vmem:[#allocation4 + $0x14] sm:$0xff] %v30
  %v40 = vlaneseq
  %v41 = vand.u32 %v40, 127
  %v42 = vadd.s32 %v41, 128
  %v43 = vadd.s32 %v41, 256
  %v44 = vadd.s32 %v41, 384
  %vm45 = vcmp.lt.s32.totalorder %v41, 0
  %v46 = vsub.s32 0, %v41
  %v47 = vsel %vm45, %v46, %v41
  %v48 = vshrl.u32 %v47, 4
  %v49 = vand.u32 %v47, 15
  %v50 = vsub.s32 0, %v49
  %v51 = vsel %vm45, %v50, %v49
  %vm52 = vcmp.lt.s32.totalorder %v42, 0
  %v53 = vsub.s32 0, %v42
  %v54 = vsel %vm52, %v53, %v42
  %v55 = vshrl.u32 %v54, 4
  %v56 = vand.u32 %v54, 15
  %v57 = vsub.s32 0, %v56
  %v58 = vsel %vm52, %v57, %v56
  %vm59 = vcmp.lt.s32.totalorder %v43, 0
  %v60 = vsub.s32 0, %v43
  %v61 = vsel %vm59, %v60, %v43
  %v62 = vshrl.u32 %v61, 4
  %v63 = vand.u32 %v61, 15
  %v64 = vsub.s32 0, %v63
  %v65 = vsel %vm59, %v64, %v63
  %vm66 = vcmp.lt.s32.totalorder %v44, 0
  %v67 = vsub.s32 0, %v44
  %v68 = vsel %vm66, %v67, %v44
  %v69 = vshrl.u32 %v68, 4
  %v70 = vand.u32 %v68, 15
  %v71 = vsub.s32 0, %v70
  %v72 = vsel %vm66, %v71, %v70
  %vm73 = vcmp.ne.s32.totalorder %v51, 0
  %vm74 = vcmp.ne.s32.totalorder %v58, 0
  %vm75 = vcmp.ne.s32.totalorder %v65, 0
  %vm76 = vcmp.ne.s32.totalorder %v72, 0
  %vm77 = vcmp.lt.s32.totalorder %v51, 0
  %vm78 = vcmp.lt.s32.totalorder %v58, 0
  %vm79 = vcmp.lt.s32.totalorder %v65, 0
  %vm80 = vcmp.lt.s32.totalorder %v72, 0
  %vm81 = vmand %vm77, %vm73
  %vm82 = vmand %vm78, %vm74
  %vm83 = vmand %vm79, %vm75
  %vm84 = vmand %vm80, %vm76
  %v85 = vadd.s32 %v51, 16
  %v86 = vadd.s32 %v58, 16
  %v87 = vadd.s32 %v65, 16
  %v88 = vadd.s32 %v72, 16
  %v89 = vsel %vm81, %v85, %v51
  %v90 = vsel %vm82, %v86, %v58
  %v91 = vsel %vm83, %v87, %v65
  %v92 = vsel %vm84, %v88, %v72
  %v93 = vadd.s32 %v89, 1
  %v94 = vadd.s32 %v90, 1
  %v95 = vadd.s32 %v91, 1
  %v96 = vadd.s32 %v92, 1
  %vm97 = vcmp.ge.s32.totalorder %v93, 0
  %vm98 = vcmp.ge.s32.totalorder %v94, 0
  %vm99 = vcmp.ge.s32.totalorder %v95, 0
  %vm100 = vcmp.ge.s32.totalorder %v96, 0
  %vm101 = vcmp.lt.s32.totalorder %v93, 16
  %vm102 = vcmp.lt.s32.totalorder %v94, 16
  %vm103 = vcmp.lt.s32.totalorder %v95, 16
  %vm104 = vcmp.lt.s32.totalorder %v96, 16
  %vm105 = vmand %vm97, %vm101
  %vm106 = vmand %vm98, %vm102
  %vm107 = vmand %vm99, %vm103
  %vm108 = vmand %vm100, %vm104
  %v109 = vadd.s32 %v89, 2
  %v110 = vadd.s32 %v90, 2
  %v111 = vadd.s32 %v91, 2
  %v112 = vadd.s32 %v92, 2
  %vm113 = vcmp.ge.s32.totalorder %v109, 0
  %vm114 = vcmp.ge.s32.totalorder %v110, 0
  %vm115 = vcmp.ge.s32.totalorder %v111, 0
  %vm116 = vcmp.ge.s32.totalorder %v112, 0
  %vm117 = vcmp.lt.s32.totalorder %v109, 16
  %vm118 = vcmp.lt.s32.totalorder %v110, 16
  %vm119 = vcmp.lt.s32.totalorder %v111, 16
  %vm120 = vcmp.lt.s32.totalorder %v112, 16
  %vm121 = vmand %vm113, %vm117
  %vm122 = vmand %vm114, %vm118
  %vm123 = vmand %vm115, %vm119
  %vm124 = vmand %vm116, %vm120
  %v125 = vadd.s32 %v89, 4294967295
  %v126 = vadd.s32 %v90, 4294967295
  %v127 = vadd.s32 %v91, 4294967295
  %v128 = vadd.s32 %v92, 4294967295
  %vm129 = vcmp.ge.s32.totalorder %v125, 0
  %vm130 = vcmp.ge.s32.totalorder %v126, 0
  %vm131 = vcmp.ge.s32.totalorder %v127, 0
  %vm132 = vcmp.ge.s32.totalorder %v128, 0
  %vm133 = vcmp.lt.s32.totalorder %v125, 16
  %vm134 = vcmp.lt.s32.totalorder %v126, 16
  %vm135 = vcmp.lt.s32.totalorder %v127, 16
  %vm136 = vcmp.lt.s32.totalorder %v128, 16
  %vm137 = vmand %vm129, %vm133
  %vm138 = vmand %vm130, %vm134
  %vm139 = vmand %vm131, %vm135
  %vm140 = vmand %vm132, %vm136
  %v141 = vadd.s32 %v89, 4294967294
  %v142 = vadd.s32 %v90, 4294967294
  %v143 = vadd.s32 %v91, 4294967294
  %v144 = vadd.s32 %v92, 4294967294
  %vm145 = vcmp.ge.s32.totalorder %v141, 0
  %vm146 = vcmp.ge.s32.totalorder %v142, 0
  %vm147 = vcmp.ge.s32.totalorder %v143, 0
  %vm148 = vcmp.ge.s32.totalorder %v144, 0
  %vm149 = vcmp.lt.s32.totalorder %v141, 16
  %vm150 = vcmp.lt.s32.totalorder %v142, 16
  %vm151 = vcmp.lt.s32.totalorder %v143, 16
  %vm152 = vcmp.lt.s32.totalorder %v144, 16
  %vm153 = vmand %vm145, %vm149
  %vm154 = vmand %vm146, %vm150
  %vm155 = vmand %vm147, %vm151
  %vm156 = vmand %vm148, %vm152
  %v157 = vld [vmem:[#allocation4] sm:$0xff]
  %v158 = vld [vmem:[#allocation4 + $0x8] sm:$0xf]
  %v159 = vld [vmem:[#allocation4 + $0x10] sm:$0xff]
  %v160 = vld [vmem:[#allocation4 + $0x18] sm:$0xf]
  %163 = vst [vmem:[#allocation1] ss:$2 sm:$0xff] %v157
  %s164 = scalar_lea.vmem [#allocation1], 16
  %165 = vst [vmem:[%s164] ss:$2 sm:$0xff] %v158
  %v166 = vld.sshfl [vmem:[#allocation1] sm:$0xff pattern:$0x75316420]
  %v167 = vld.sshfl [vmem:[#allocation1 + $0x8] sm:$0xff pattern:$0x75316420]
  %v168 = vld.sshfl [vmem:[#allocation1 + $0x10] sm:$0xff pattern:$0x75316420]
  %169 = vrot.lane.b32.xlu0 %v166, 17
  %v170 = vpop.permute.xlu0 %169
  %171 = vrot.lane.b32.xlu0 %v167, 17
  %v172 = vpop.permute.xlu0 %171
  %173 = vrot.lane.b32.xlu0 %v168, 17
  %v174 = vpop.permute.xlu0 %173
  %vm175 = vcmask 138240
  %v176 = vsel %vm175, %v170, %v172
  %v177 = vsel %vm175, %v172, %v174
  %182 = vst [vmem:[#allocation1] ss:$2 sm:$0xff] %v159
  %s183 = scalar_lea.vmem [#allocation1], 16
  %184 = vst [vmem:[%s183] ss:$2 sm:$0xff] %v160
  %v185 = vld.sshfl [vmem:[#allocation1] sm:$0xff pattern:$0x75316420]
  %v186 = vld.sshfl [vmem:[#allocation1 + $0x8] sm:$0xff pattern:$0x75316420]
  %v187 = vld.sshfl [vmem:[#allocation1 + $0x10] sm:$0xff pattern:$0x75316420]
  %188 = vrot.lane.b32.xlu0 %v185, 17
  %v189 = vpop.permute.xlu0 %188
  %190 = vrot.lane.b32.xlu0 %v186, 17
  %v191 = vpop.permute.xlu0 %190
  %192 = vrot.lane.b32.xlu0 %v187, 17
  %v193 = vpop.permute.xlu0 %192
  %v194 = vsel %vm175, %v189, %v191
  %v195 = vsel %vm175, %v191, %v193
  %v198 = vsel %vm137, 1, 0
  %v199 = vsel %vm138, 1, 0
  %v200 = vsel %vm139, 1, 0
  %v201 = vsel %vm140, 1, 0
  %vm202 = vcmp.eq.s32.totalorder %v198, 1
  %vm203 = vcmp.eq.s32.totalorder %v199, 1
  %vm204 = vcmp.eq.s32.totalorder %v200, 1
  %vm205 = vcmp.eq.s32.totalorder %v201, 1
  %v206 = vsel %vm202, %v176, 0.0
  %v207 = vsel %vm203, %v177, 0.0
  %v208 = vsel %vm204, %v194, 0.0
  %v209 = vsel %vm205, %v195, 0.0
  %v210 = vld [vmem:[#allocation4] sm:$0xff]
  %v211 = vld [vmem:[#allocation4 + $0x8] sm:$0xf]
  %v212 = vld [vmem:[#allocation4 + $0x10] sm:$0xff]
  %v213 = vld [vmem:[#allocation4 + $0x18] sm:$0xf]
  %216 = vst [vmem:[#allocation1] ss:$2 sm:$0xff] %v210
  %s217 = scalar_lea.vmem [#allocation1], 16
  %218 = vst [vmem:[%s217] ss:$2 sm:$0xff] %v211
  %v219 = vld.sshfl [vmem:[#allocation1] sm:$0xff pattern:$0x75316420]
  %v220 = vld.sshfl [vmem:[#allocation1 + $0x8] sm:$0xff pattern:$0x75316420]
  %v221 = vld.sshfl [vmem:[#allocation1 + $0x10] sm:$0xff pattern:$0x75316420]
  %222 = vrot.lane.b32.xlu0 %v219, 16
  %v223 = vpop.permute.xlu0 %222
  %224 = vrot.lane.b32.xlu0 %v220, 16
  %v225 = vpop.permute.xlu0 %224
  %226 = vrot.lane.b32.xlu0 %v221, 16
  %v227 = vpop.permute.xlu0 %226
  %vm228 = vcmask 130048
  %v229 = vsel %vm228, %v223, %v225
  %v230 = vsel %vm228, %v225, %v227
  %233 = vst [vmem:[#allocation1] ss:$2 sm:$0xff] %v212
  %s234 = scalar_lea.vmem [#allocation1], 16
  %235 = vst [vmem:[%s234] ss:$2 sm:$0xff] %v213
  %v236 = vld.sshfl [vmem:[#allocation1] sm:$0xff pattern:$0x75316420]
  %v237 = vld.sshfl [vmem:[#allocation1 + $0x8] sm:$0xff pattern:$0x75316420]
  %v238 = vld.sshfl [vmem:[#allocation1 + $0x10] sm:$0xff pattern:$0x75316420]
  %239 = vrot.lane.b32.xlu0 %v236, 16
  %v240 = vpop.permute.xlu0 %239
  %241 = vrot.lane.b32.xlu0 %v237, 16
  %v242 = vpop.permute.xlu0 %241
  %243 = vrot.lane.b32.xlu0 %v238, 16
  %v244 = vpop.permute.xlu0 %243
  %v245 = vsel %vm228, %v240, %v242
  %v246 = vsel %vm228, %v242, %v244
  %v247 = vld [vmem:[#allocation4] sm:$0xff]
  %v248 = vld [vmem:[#allocation4 + $0x8] sm:$0xf]
  %v249 = vld [vmem:[#allocation4 + $0x10] sm:$0xff]
  %v250 = vld [vmem:[#allocation4 + $0x18] sm:$0xf]
  %253 = vst [vmem:[#allocation1] ss:$2 sm:$0xff] %v247
  %s254 = scalar_lea.vmem [#allocation1], 16
  %255 = vst [vmem:[%s254] ss:$2 sm:$0xff] %v248
  %v256 = vld.sshfl [vmem:[#allocation1] sm:$0xff pattern:$0x75316420]
  %v257 = vld.sshfl [vmem:[#allocation1 + $0x8] sm:$0xff pattern:$0x75316420]
  %v258 = vld.sshfl [vmem:[#allocation1 + $0x10] sm:$0xff pattern:$0x75316420]
  %259 = vrot.lane.b32.xlu0 %v256, 15
  %v260 = vpop.permute.xlu0 %259
  %261 = vrot.lane.b32.xlu0 %v257, 15
  %v262 = vpop.permute.xlu0 %261
  %263 = vrot.lane.b32.xlu0 %v258, 15
  %v264 = vpop.permute.xlu0 %263
  %vm265 = vcmask 121856
  %v266 = vsel %vm265, %v260, %v262
  %v267 = vsel %vm265, %v262, %v264
  %272 = vst [vmem:[#allocation1] ss:$2 sm:$0xff] %v249
  %s273 = scalar_lea.vmem [#allocation1], 16
  %274 = vst [vmem:[%s273] ss:$2 sm:$0xff] %v250
  %v275 = vld.sshfl [vmem:[#allocation1] sm:$0xff pattern:$0x75316420]
  %v276 = vld.sshfl [vmem:[#allocation1 + $0x8] sm:$0xff pattern:$0x75316420]
  %v277 = vld.sshfl [vmem:[#allocation1 + $0x10] sm:$0xff pattern:$0x75316420]
  %278 = vrot.lane.b32.xlu0 %v275, 15
  %v279 = vpop.permute.xlu0 %278
  %280 = vrot.lane.b32.xlu0 %v276, 15
  %v281 = vpop.permute.xlu0 %280
  %282 = vrot.lane.b32.xlu0 %v277, 15
  %v283 = vpop.permute.xlu0 %282
  %v284 = vsel %vm265, %v279, %v281
  %v285 = vsel %vm265, %v281, %v283
  %v288 = vsel %vm105, 1, 0
  %v289 = vsel %vm106, 1, 0
  %v290 = vsel %vm107, 1, 0
  %v291 = vsel %vm108, 1, 0
  %vm292 = vcmp.eq.s32.totalorder %v288, 1
  %vm293 = vcmp.eq.s32.totalorder %v289, 1
  %vm294 = vcmp.eq.s32.totalorder %v290, 1
  %vm295 = vcmp.eq.s32.totalorder %v291, 1
  %v296 = vsel %vm292, %v266, 0.0
  %v297 = vsel %vm293, %v267, 0.0
  %v298 = vsel %vm294, %v284, 0.0
  %v299 = vsel %vm295, %v285, 0.0
  %v300 = vld [vmem:[#allocation4] sm:$0xff]
  %v301 = vld [vmem:[#allocation4 + $0x8] sm:$0xf]
  %v302 = vld [vmem:[#allocation4 + $0x10] sm:$0xff]
  %v303 = vld [vmem:[#allocation4 + $0x18] sm:$0xf]
  %306 = vst [vmem:[#allocation1] ss:$2 sm:$0xff] %v300
  %s307 = scalar_lea.vmem [#allocation1], 16
  %308 = vst [vmem:[%s307] ss:$2 sm:$0xff] %v301
  %v309 = vld.sshfl [vmem:[#allocation1] sm:$0xff pattern:$0x75316420]
  %v310 = vld.sshfl [vmem:[#allocation1 + $0x8] sm:$0xff pattern:$0x75316420]
  %v311 = vld.sshfl [vmem:[#allocation1 + $0x10] sm:$0xff pattern:$0x75316420]
  %312 = vrot.lane.b32.xlu0 %v309, 1
  %v313 = vpop.permute.xlu0 %312
  %314 = vrot.lane.b32.xlu0 %v310, 1
  %v315 = vpop.permute.xlu0 %314
  %316 = vrot.lane.b32.xlu0 %v311, 1
  %v317 = vpop.permute.xlu0 %316
  %vm318 = vcmask 7168
  %v319 = vsel %vm318, %v313, %v315
  %v320 = vsel %vm318, %v315, %v317
  %325 = vst [vmem:[#allocation1] ss:$2 sm:$0xff] %v302
  %s326 = scalar_lea.vmem [#allocation1], 16
  %327 = vst [vmem:[%s326] ss:$2 sm:$0xff] %v303
  %v328 = vld.sshfl [vmem:[#allocation1] sm:$0xff pattern:$0x75316420]
  %v329 = vld.sshfl [vmem:[#allocation1 + $0x8] sm:$0xff pattern:$0x75316420]
  %v330 = vld.sshfl [vmem:[#allocation1 + $0x10] sm:$0xff pattern:$0x75316420]
  %331 = vrot.lane.b32.xlu0 %v328, 1
  %v332 = vpop.permute.xlu0 %331
  %333 = vrot.lane.b32.xlu0 %v329, 1
  %v334 = vpop.permute.xlu0 %333
  %335 = vrot.lane.b32.xlu0 %v330, 1
  %v336 = vpop.permute.xlu0 %335
  %v337 = vsel %vm318, %v332, %v334
  %v338 = vsel %vm318, %v334, %v336
  %v341 = vsel %vm202, %v319, 0.0
  %v342 = vsel %vm203, %v320, 0.0
  %v343 = vsel %vm204, %v337, 0.0
  %v344 = vsel %vm205, %v338, 0.0
  %v345 = vld [vmem:[#allocation4 + $0x4] sm:$0xff]
  %v346 = vld [vmem:[#allocation4 + $0x14] sm:$0xff]
  %348 = vst [vmem:[#allocation1] ss:$2 sm:$0xff] %v345
  %v349 = vld.sshfl [vmem:[#allocation1] sm:$0xff pattern:$0x75316420]
  %v350 = vld.sshfl [vmem:[#allocation1 + $0x8] sm:$0xff pattern:$0x75316420]
  %354 = vst [vmem:[#allocation1] ss:$2 sm:$0xff] %v346
  %v355 = vld.sshfl [vmem:[#allocation1] sm:$0xff pattern:$0x75316420]
  %v356 = vld.sshfl [vmem:[#allocation1 + $0x8] sm:$0xff pattern:$0x75316420]
  %v359 = vld [vmem:[#allocation4 + $0x4] sm:$0xff]
  %v360 = vld [vmem:[#allocation4 + $0xc] sm:$0xf]
  %v361 = vld [vmem:[#allocation4 + $0x14] sm:$0xff]
  %v362 = vld [vmem:[#allocation4 + $0x1c] sm:$0xf]
  %365 = vst [vmem:[#allocation1] ss:$2 sm:$0xff] %v359
  %s366 = scalar_lea.vmem [#allocation1], 16
  %367 = vst [vmem:[%s366] ss:$2 sm:$0xff] %v360
  %v368 = vld.sshfl [vmem:[#allocation1] sm:$0xff pattern:$0x75316420]
  %v369 = vld.sshfl [vmem:[#allocation1 + $0x8] sm:$0xff pattern:$0x75316420]
  %v370 = vld.sshfl [vmem:[#allocation1 + $0x10] sm:$0xff pattern:$0x75316420]
  %371 = vrot.lane.b32.xlu0 %v368, 127
  %v372 = vpop.permute.xlu0 %371
  %373 = vrot.lane.b32.xlu0 %v369, 127
  %v374 = vpop.permute.xlu0 %373
  %375 = vrot.lane.b32.xlu0 %v370, 127
  %v376 = vpop.permute.xlu0 %375
  %vm377 = vcmask 1039360
  %v378 = vsel %vm377, %v372, %v374
  %v379 = vsel %vm377, %v374, %v376
  %384 = vst [vmem:[#allocation1] ss:$2 sm:$0xff] %v361
  %s385 = scalar_lea.vmem [#allocation1], 16
  %386 = vst [vmem:[%s385] ss:$2 sm:$0xff] %v362
  %v387 = vld.sshfl [vmem:[#allocation1] sm:$0xff pattern:$0x75316420]
  %v388 = vld.sshfl [vmem:[#allocation1 + $0x8] sm:$0xff pattern:$0x75316420]
  %v389 = vld.sshfl [vmem:[#allocation1 + $0x10] sm:$0xff pattern:$0x75316420]
  %390 = vrot.lane.b32.xlu0 %v387, 127
  %v391 = vpop.permute.xlu0 %390
  %392 = vrot.lane.b32.xlu0 %v388, 127
  %v393 = vpop.permute.xlu0 %392
  %394 = vrot.lane.b32.xlu0 %v389, 127
  %v395 = vpop.permute.xlu0 %394
  %v396 = vsel %vm377, %v391, %v393
  %v397 = vsel %vm377, %v393, %v395
  %v400 = vsel %vm292, %v378, 0.0
  %v401 = vsel %vm293, %v379, 0.0
  %v402 = vsel %vm294, %v396, 0.0
  %v403 = vsel %vm295, %v397, 0.0
  %v404 = vld [vmem:[#allocation4 + $0x4] sm:$0xff]
  %v405 = vld [vmem:[#allocation4 + $0xc] sm:$0xf]
  %v406 = vld [vmem:[#allocation4 + $0x14] sm:$0xff]
  %v407 = vld [vmem:[#allocation4 + $0x1c] sm:$0xf]
  %410 = vst [vmem:[#allocation1] ss:$2 sm:$0xff] %v404
  %s411 = scalar_lea.vmem [#allocation1], 16
  %412 = vst [vmem:[%s411] ss:$2 sm:$0xff] %v405
  %v413 = vld.sshfl [vmem:[#allocation1] sm:$0xff pattern:$0x75316420]
  %v414 = vld.sshfl [vmem:[#allocation1 + $0x8] sm:$0xff pattern:$0x75316420]
  %v415 = vld.sshfl [vmem:[#allocation1 + $0x10] sm:$0xff pattern:$0x75316420]
  %416 = vrot.lane.b32.xlu0 %v413, 113
  %v417 = vpop.permute.xlu0 %416
  %418 = vrot.lane.b32.xlu0 %v414, 113
  %v419 = vpop.permute.xlu0 %418
  %420 = vrot.lane.b32.xlu0 %v415, 113
  %v421 = vpop.permute.xlu0 %420
  %vm422 = vcmask 924672
  %v423 = vsel %vm422, %v417, %v419
  %v424 = vsel %vm422, %v419, %v421
  %429 = vst [vmem:[#allocation1] ss:$2 sm:$0xff] %v406
  %s430 = scalar_lea.vmem [#allocation1], 16
  %431 = vst [vmem:[%s430] ss:$2 sm:$0xff] %v407
  %v432 = vld.sshfl [vmem:[#allocation1] sm:$0xff pattern:$0x75316420]
  %v433 = vld.sshfl [vmem:[#allocation1 + $0x8] sm:$0xff pattern:$0x75316420]
  %v434 = vld.sshfl [vmem:[#allocation1 + $0x10] sm:$0xff pattern:$0x75316420]
  %435 = vrot.lane.b32.xlu0 %v432, 113
  %v436 = vpop.permute.xlu0 %435
  %437 = vrot.lane.b32.xlu0 %v433, 113
  %v438 = vpop.permute.xlu0 %437
  %439 = vrot.lane.b32.xlu0 %v434, 113
  %v440 = vpop.permute.xlu0 %439
  %v441 = vsel %vm422, %v436, %v438
  %v442 = vsel %vm422, %v438, %v440
  %v445 = vsel %vm202, %v423, 0.0
  %v446 = vsel %vm203, %v424, 0.0
  %v447 = vsel %vm204, %v441, 0.0
  %v448 = vsel %vm205, %v442, 0.0
  %v449 = vld [vmem:[#allocation4 + $0x4] sm:$0xff]
  %v450 = vld [vmem:[#allocation4 + $0xc] sm:$0xf]
  %v451 = vld [vmem:[#allocation4 + $0x14] sm:$0xff]
  %v452 = vld [vmem:[#allocation4 + $0x1c] sm:$0xf]
  %455 = vst [vmem:[#allocation1] ss:$2 sm:$0xff] %v449
  %s456 = scalar_lea.vmem [#allocation1], 16
  %457 = vst [vmem:[%s456] ss:$2 sm:$0xff] %v450
  %v458 = vld.sshfl [vmem:[#allocation1] sm:$0xff pattern:$0x75316420]
  %v459 = vld.sshfl [vmem:[#allocation1 + $0x8] sm:$0xff pattern:$0x75316420]
  %v460 = vld.sshfl [vmem:[#allocation1 + $0x10] sm:$0xff pattern:$0x75316420]
  %461 = vrot.lane.b32.xlu0 %v458, 112
  %v462 = vpop.permute.xlu0 %461
  %463 = vrot.lane.b32.xlu0 %v459, 112
  %v464 = vpop.permute.xlu0 %463
  %465 = vrot.lane.b32.xlu0 %v460, 112
  %v466 = vpop.permute.xlu0 %465
  %vm467 = vcmask 916480
  %v468 = vsel %vm467, %v462, %v464
  %v469 = vsel %vm467, %v464, %v466
  %472 = vst [vmem:[#allocation1] ss:$2 sm:$0xff] %v451
  %s473 = scalar_lea.vmem [#allocation1], 16
  %474 = vst [vmem:[%s473] ss:$2 sm:$0xff] %v452
  %v475 = vld.sshfl [vmem:[#allocation1] sm:$0xff pattern:$0x75316420]
  %v476 = vld.sshfl [vmem:[#allocation1 + $0x8] sm:$0xff pattern:$0x75316420]
  %v477 = vld.sshfl [vmem:[#allocation1 + $0x10] sm:$0xff pattern:$0x75316420]
  %478 = vrot.lane.b32.xlu0 %v475, 112
  %v479 = vpop.permute.xlu0 %478
  %480 = vrot.lane.b32.xlu0 %v476, 112
  %v481 = vpop.permute.xlu0 %480
  %482 = vrot.lane.b32.xlu0 %v477, 112
  %v483 = vpop.permute.xlu0 %482
  %v484 = vsel %vm467, %v479, %v481
  %v485 = vsel %vm467, %v481, %v483
  %v486 = vld [vmem:[#allocation4 + $0x4] sm:$0xff]
  %v487 = vld [vmem:[#allocation4 + $0xc] sm:$0xf]
  %v488 = vld [vmem:[#allocation4 + $0x14] sm:$0xff]
  %v489 = vld [vmem:[#allocation4 + $0x1c] sm:$0xf]
  %492 = vst [vmem:[#allocation1] ss:$2 sm:$0xff] %v486
  %s493 = scalar_lea.vmem [#allocation1], 16
  %494 = vst [vmem:[%s493] ss:$2 sm:$0xff] %v487
  %v495 = vld.sshfl [vmem:[#allocation1] sm:$0xff pattern:$0x75316420]
  %v496 = vld.sshfl [vmem:[#allocation1 + $0x8] sm:$0xff pattern:$0x75316420]
  %v497 = vld.sshfl [vmem:[#allocation1 + $0x10] sm:$0xff pattern:$0x75316420]
  %498 = vrot.lane.b32.xlu0 %v495, 111
  %v499 = vpop.permute.xlu0 %498
  %500 = vrot.lane.b32.xlu0 %v496, 111
  %v501 = vpop.permute.xlu0 %500
  %502 = vrot.lane.b32.xlu0 %v497, 111
  %v503 = vpop.permute.xlu0 %502
  %vm504 = vcmask 908288
  %v505 = vsel %vm504, %v499, %v501
  %v506 = vsel %vm504, %v501, %v503
  %511 = vst [vmem:[#allocation1] ss:$2 sm:$0xff] %v488
  %s512 = scalar_lea.vmem [#allocation1], 16
  %513 = vst [vmem:[%s512] ss:$2 sm:$0xff] %v489
  %v514 = vld.sshfl [vmem:[#allocation1] sm:$0xff pattern:$0x75316420]
  %v515 = vld.sshfl [vmem:[#allocation1 + $0x8] sm:$0xff pattern:$0x75316420]
  %v516 = vld.sshfl [vmem:[#allocation1 + $0x10] sm:$0xff pattern:$0x75316420]
  %517 = vrot.lane.b32.xlu0 %v514, 111
  %v518 = vpop.permute.xlu0 %517
  %519 = vrot.lane.b32.xlu0 %v515, 111
  %v520 = vpop.permute.xlu0 %519
  %521 = vrot.lane.b32.xlu0 %v516, 111
  %v522 = vpop.permute.xlu0 %521
  %v523 = vsel %vm504, %v518, %v520
  %v524 = vsel %vm504, %v520, %v522
  %v527 = vsel %vm292, %v505, 0.0
  %v528 = vsel %vm293, %v506, 0.0
  %v529 = vsel %vm294, %v523, 0.0
  %v530 = vsel %vm295, %v524, 0.0
  %v531 = vld [vmem:[#allocation3] sm:$0xff]
  %v532 = vld [vmem:[#allocation3 + $0x8] sm:$0xf]
  %v533 = vld [vmem:[#allocation3 + $0x10] sm:$0xff]
  %v534 = vld [vmem:[#allocation3 + $0x18] sm:$0xf]
  %537 = vst [vmem:[#allocation1] ss:$2 sm:$0xff] %v531
  %s538 = scalar_lea.vmem [#allocation1], 16
  %539 = vst [vmem:[%s538] ss:$2 sm:$0xff] %v532
  %v540 = vld.sshfl [vmem:[#allocation1] sm:$0xff pattern:$0x75316420]
  %v541 = vld.sshfl [vmem:[#allocation1 + $0x8] sm:$0xff pattern:$0x75316420]
  %v542 = vld.sshfl [vmem:[#allocation1 + $0x10] sm:$0xff pattern:$0x75316420]
  %543 = vrot.lane.b32.xlu0 %v540, 34
  %v544 = vpop.permute.xlu0 %543
  %545 = vrot.lane.b32.xlu0 %v541, 34
  %v546 = vpop.permute.xlu0 %545
  %547 = vrot.lane.b32.xlu0 %v542, 34
  %v548 = vpop.permute.xlu0 %547
  %vm549 = vcmask 277504
  %v550 = vsel %vm549, %v544, %v546
  %v551 = vsel %vm549, %v546, %v548
  %556 = vst [vmem:[#allocation1] ss:$2 sm:$0xff] %v533
  %s557 = scalar_lea.vmem [#allocation1], 16
  %558 = vst [vmem:[%s557] ss:$2 sm:$0xff] %v534
  %v559 = vld.sshfl [vmem:[#allocation1] sm:$0xff pattern:$0x75316420]
  %v560 = vld.sshfl [vmem:[#allocation1 + $0x8] sm:$0xff pattern:$0x75316420]
  %v561 = vld.sshfl [vmem:[#allocation1 + $0x10] sm:$0xff pattern:$0x75316420]
  %562 = vrot.lane.b32.xlu0 %v559, 34
  %v563 = vpop.permute.xlu0 %562
  %564 = vrot.lane.b32.xlu0 %v560, 34
  %v565 = vpop.permute.xlu0 %564
  %566 = vrot.lane.b32.xlu0 %v561, 34
  %v567 = vpop.permute.xlu0 %566
  %v568 = vsel %vm549, %v563, %v565
  %v569 = vsel %vm549, %v565, %v567
  %v572 = vsel %vm153, 1, 0
  %v573 = vsel %vm154, 1, 0
  %v574 = vsel %vm155, 1, 0
  %v575 = vsel %vm156, 1, 0
  %vm576 = vcmp.eq.s32.totalorder %v572, 1
  %vm577 = vcmp.eq.s32.totalorder %v573, 1
  %vm578 = vcmp.eq.s32.totalorder %v574, 1
  %vm579 = vcmp.eq.s32.totalorder %v575, 1
  %v580 = vsel %vm576, %v550, 0.0
  %v581 = vsel %vm577, %v551, 0.0
  %v582 = vsel %vm578, %v568, 0.0
  %v583 = vsel %vm579, %v569, 0.0
  %v584 = vld [vmem:[#allocation3] sm:$0xff]
  %v585 = vld [vmem:[#allocation3 + $0x8] sm:$0xf]
  %v586 = vld [vmem:[#allocation3 + $0x10] sm:$0xff]
  %v587 = vld [vmem:[#allocation3 + $0x18] sm:$0xf]
  %590 = vst [vmem:[#allocation1] ss:$2 sm:$0xff] %v584
  %s591 = scalar_lea.vmem [#allocation1], 16
  %592 = vst [vmem:[%s591] ss:$2 sm:$0xff] %v585
  %v593 = vld.sshfl [vmem:[#allocation1] sm:$0xff pattern:$0x75316420]
  %v594 = vld.sshfl [vmem:[#allocation1 + $0x8] sm:$0xff pattern:$0x75316420]
  %v595 = vld.sshfl [vmem:[#allocation1 + $0x10] sm:$0xff pattern:$0x75316420]
  %596 = vrot.lane.b32.xlu0 %v593, 32
  %v597 = vpop.permute.xlu0 %596
  %598 = vrot.lane.b32.xlu0 %v594, 32
  %v599 = vpop.permute.xlu0 %598
  %600 = vrot.lane.b32.xlu0 %v595, 32
  %v601 = vpop.permute.xlu0 %600
  %vm602 = vcmask 261120
  %v603 = vsel %vm602, %v597, %v599
  %v604 = vsel %vm602, %v599, %v601
  %609 = vst [vmem:[#allocation1] ss:$2 sm:$0xff] %v586
  %s610 = scalar_lea.vmem [#allocation1], 16
  %611 = vst [vmem:[%s610] ss:$2 sm:$0xff] %v587
  %v612 = vld.sshfl [vmem:[#allocation1] sm:$0xff pattern:$0x75316420]
  %v613 = vld.sshfl [vmem:[#allocation1 + $0x8] sm:$0xff pattern:$0x75316420]
  %v614 = vld.sshfl [vmem:[#allocation1 + $0x10] sm:$0xff pattern:$0x75316420]
  %615 = vrot.lane.b32.xlu0 %v612, 32
  %v616 = vpop.permute.xlu0 %615
  %617 = vrot.lane.b32.xlu0 %v613, 32
  %v618 = vpop.permute.xlu0 %617
  %619 = vrot.lane.b32.xlu0 %v614, 32
  %v620 = vpop.permute.xlu0 %619
  %v621 = vsel %vm602, %v616, %v618
  %v622 = vsel %vm602, %v618, %v620
  %v625 = vld [vmem:[#allocation3] sm:$0xff]
  %v626 = vld [vmem:[#allocation3 + $0x8] sm:$0xf]
  %v627 = vld [vmem:[#allocation3 + $0x10] sm:$0xff]
  %v628 = vld [vmem:[#allocation3 + $0x18] sm:$0xf]
  %631 = vst [vmem:[#allocation1] ss:$2 sm:$0xff] %v625
  %s632 = scalar_lea.vmem [#allocation1], 16
  %633 = vst [vmem:[%s632] ss:$2 sm:$0xff] %v626
  %v634 = vld.sshfl [vmem:[#allocation1] sm:$0xff pattern:$0x75316420]
  %v635 = vld.sshfl [vmem:[#allocation1 + $0x8] sm:$0xff pattern:$0x75316420]
  %v636 = vld.sshfl [vmem:[#allocation1 + $0x10] sm:$0xff pattern:$0x75316420]
  %637 = vrot.lane.b32.xlu0 %v634, 30
  %v638 = vpop.permute.xlu0 %637
  %639 = vrot.lane.b32.xlu0 %v635, 30
  %v640 = vpop.permute.xlu0 %639
  %641 = vrot.lane.b32.xlu0 %v636, 30
  %v642 = vpop.permute.xlu0 %641
  %vm643 = vcmask 244736
  %v644 = vsel %vm643, %v638, %v640
  %v645 = vsel %vm643, %v640, %v642
  %650 = vst [vmem:[#allocation1] ss:$2 sm:$0xff] %v627
  %s651 = scalar_lea.vmem [#allocation1], 16
  %652 = vst [vmem:[%s651] ss:$2 sm:$0xff] %v628
  %v653 = vld.sshfl [vmem:[#allocation1] sm:$0xff pattern:$0x75316420]
  %v654 = vld.sshfl [vmem:[#allocation1 + $0x8] sm:$0xff pattern:$0x75316420]
  %v655 = vld.sshfl [vmem:[#allocation1 + $0x10] sm:$0xff pattern:$0x75316420]
  %656 = vrot.lane.b32.xlu0 %v653, 30
  %v657 = vpop.permute.xlu0 %656
  %658 = vrot.lane.b32.xlu0 %v654, 30
  %v659 = vpop.permute.xlu0 %658
  %660 = vrot.lane.b32.xlu0 %v655, 30
  %v661 = vpop.permute.xlu0 %660
  %v662 = vsel %vm643, %v657, %v659
  %v663 = vsel %vm643, %v659, %v661
  %v666 = vsel %vm121, 1, 0
  %v667 = vsel %vm122, 1, 0
  %v668 = vsel %vm123, 1, 0
  %v669 = vsel %vm124, 1, 0
  %vm670 = vcmp.eq.s32.totalorder %v666, 1
  %vm671 = vcmp.eq.s32.totalorder %v667, 1
  %vm672 = vcmp.eq.s32.totalorder %v668, 1
  %vm673 = vcmp.eq.s32.totalorder %v669, 1
  %v674 = vsel %vm670, %v644, 0.0
  %v675 = vsel %vm671, %v645, 0.0
  %v676 = vsel %vm672, %v662, 0.0
  %v677 = vsel %vm673, %v663, 0.0
  %v678 = vld [vmem:[#allocation3] sm:$0xff]
  %v679 = vld [vmem:[#allocation3 + $0x8] sm:$0xf]
  %v680 = vld [vmem:[#allocation3 + $0x10] sm:$0xff]
  %v681 = vld [vmem:[#allocation3 + $0x18] sm:$0xf]
  %684 = vst [vmem:[#allocation1] ss:$2 sm:$0xff] %v678
  %s685 = scalar_lea.vmem [#allocation1], 16
  %686 = vst [vmem:[%s685] ss:$2 sm:$0xff] %v679
  %v687 = vld.sshfl [vmem:[#allocation1] sm:$0xff pattern:$0x75316420]
  %v688 = vld.sshfl [vmem:[#allocation1 + $0x8] sm:$0xff pattern:$0x75316420]
  %v689 = vld.sshfl [vmem:[#allocation1 + $0x10] sm:$0xff pattern:$0x75316420]
  %690 = vrot.lane.b32.xlu0 %v687, 2
  %v691 = vpop.permute.xlu0 %690
  %692 = vrot.lane.b32.xlu0 %v688, 2
  %v693 = vpop.permute.xlu0 %692
  %694 = vrot.lane.b32.xlu0 %v689, 2
  %v695 = vpop.permute.xlu0 %694
  %vm696 = vcmask 15360
  %v697 = vsel %vm696, %v691, %v693
  %v698 = vsel %vm696, %v693, %v695
  %703 = vst [vmem:[#allocation1] ss:$2 sm:$0xff] %v680
  %s704 = scalar_lea.vmem [#allocation1], 16
  %705 = vst [vmem:[%s704] ss:$2 sm:$0xff] %v681
  %v706 = vld.sshfl [vmem:[#allocation1] sm:$0xff pattern:$0x75316420]
  %v707 = vld.sshfl [vmem:[#allocation1 + $0x8] sm:$0xff pattern:$0x75316420]
  %v708 = vld.sshfl [vmem:[#allocation1 + $0x10] sm:$0xff pattern:$0x75316420]
  %709 = vrot.lane.b32.xlu0 %v706, 2
  %v710 = vpop.permute.xlu0 %709
  %711 = vrot.lane.b32.xlu0 %v707, 2
  %v712 = vpop.permute.xlu0 %711
  %713 = vrot.lane.b32.xlu0 %v708, 2
  %v714 = vpop.permute.xlu0 %713
  %v715 = vsel %vm696, %v710, %v712
  %v716 = vsel %vm696, %v712, %v714
  %v719 = vsel %vm576, %v697, 0.0
  %v720 = vsel %vm577, %v698, 0.0
  %v721 = vsel %vm578, %v715, 0.0
  %v722 = vsel %vm579, %v716, 0.0
  %v723 = vld [vmem:[#allocation3 + $0x4] sm:$0xff]
  %v724 = vld [vmem:[#allocation3 + $0x14] sm:$0xff]
  %726 = vst [vmem:[#allocation1] ss:$2 sm:$0xff] %v723
  %v727 = vld.sshfl [vmem:[#allocation1] sm:$0xff pattern:$0x75316420]
  %v728 = vld.sshfl [vmem:[#allocation1 + $0x8] sm:$0xff pattern:$0x75316420]
  %730 = vst [vmem:[#allocation1] ss:$2 sm:$0xff] %v724
  %v731 = vld.sshfl [vmem:[#allocation1] sm:$0xff pattern:$0x75316420]
  %v732 = vld.sshfl [vmem:[#allocation1 + $0x8] sm:$0xff pattern:$0x75316420]
  %v733 = vld [vmem:[#allocation3 + $0x4] sm:$0xff]
  %v734 = vld [vmem:[#allocation3 + $0xc] sm:$0xf]
  %v735 = vld [vmem:[#allocation3 + $0x14] sm:$0xff]
  %v736 = vld [vmem:[#allocation3 + $0x1c] sm:$0xf]
  %739 = vst [vmem:[#allocation1] ss:$2 sm:$0xff] %v733
  %s740 = scalar_lea.vmem [#allocation1], 16
  %741 = vst [vmem:[%s740] ss:$2 sm:$0xff] %v734
  %v742 = vld.sshfl [vmem:[#allocation1] sm:$0xff pattern:$0x75316420]
  %v743 = vld.sshfl [vmem:[#allocation1 + $0x8] sm:$0xff pattern:$0x75316420]
  %v744 = vld.sshfl [vmem:[#allocation1 + $0x10] sm:$0xff pattern:$0x75316420]
  %745 = vrot.lane.b32.xlu0 %v742, 126
  %v746 = vpop.permute.xlu0 %745
  %747 = vrot.lane.b32.xlu0 %v743, 126
  %v748 = vpop.permute.xlu0 %747
  %749 = vrot.lane.b32.xlu0 %v744, 126
  %v750 = vpop.permute.xlu0 %749
  %vm751 = vcmask 1031168
  %v752 = vsel %vm751, %v746, %v748
  %v753 = vsel %vm751, %v748, %v750
  %758 = vst [vmem:[#allocation1] ss:$2 sm:$0xff] %v735
  %s759 = scalar_lea.vmem [#allocation1], 16
  %760 = vst [vmem:[%s759] ss:$2 sm:$0xff] %v736
  %v761 = vld.sshfl [vmem:[#allocation1] sm:$0xff pattern:$0x75316420]
  %v762 = vld.sshfl [vmem:[#allocation1 + $0x8] sm:$0xff pattern:$0x75316420]
  %v763 = vld.sshfl [vmem:[#allocation1 + $0x10] sm:$0xff pattern:$0x75316420]
  %764 = vrot.lane.b32.xlu0 %v761, 126
  %v765 = vpop.permute.xlu0 %764
  %766 = vrot.lane.b32.xlu0 %v762, 126
  %v767 = vpop.permute.xlu0 %766
  %768 = vrot.lane.b32.xlu0 %v763, 126
  %v769 = vpop.permute.xlu0 %768
  %v770 = vsel %vm751, %v765, %v767
  %v771 = vsel %vm751, %v767, %v769
  %v774 = vsel %vm670, %v752, 0.0
  %v775 = vsel %vm671, %v753, 0.0
  %v776 = vsel %vm672, %v770, 0.0
  %v777 = vsel %vm673, %v771, 0.0
  %v778 = vld [vmem:[#allocation3 + $0x4] sm:$0xff]
  %v779 = vld [vmem:[#allocation3 + $0xc] sm:$0xf]
  %v780 = vld [vmem:[#allocation3 + $0x14] sm:$0xff]
  %v781 = vld [vmem:[#allocation3 + $0x1c] sm:$0xf]
  %784 = vst [vmem:[#allocation1] ss:$2 sm:$0xff] %v778
  %s785 = scalar_lea.vmem [#allocation1], 16
  %786 = vst [vmem:[%s785] ss:$2 sm:$0xff] %v779
  %v787 = vld.sshfl [vmem:[#allocation1] sm:$0xff pattern:$0x75316420]
  %v788 = vld.sshfl [vmem:[#allocation1 + $0x8] sm:$0xff pattern:$0x75316420]
  %v789 = vld.sshfl [vmem:[#allocation1 + $0x10] sm:$0xff pattern:$0x75316420]
  %790 = vrot.lane.b32.xlu0 %v787, 98
  %v791 = vpop.permute.xlu0 %790
  %792 = vrot.lane.b32.xlu0 %v788, 98
  %v793 = vpop.permute.xlu0 %792
  %794 = vrot.lane.b32.xlu0 %v789, 98
  %v795 = vpop.permute.xlu0 %794
  %vm796 = vcmask 801792
  %v797 = vsel %vm796, %v791, %v793
  %v798 = vsel %vm796, %v793, %v795
  %803 = vst [vmem:[#allocation1] ss:$2 sm:$0xff] %v780
  %s804 = scalar_lea.vmem [#allocation1], 16
  %805 = vst [vmem:[%s804] ss:$2 sm:$0xff] %v781
  %v806 = vld.sshfl [vmem:[#allocation1] sm:$0xff pattern:$0x75316420]
  %v807 = vld.sshfl [vmem:[#allocation1 + $0x8] sm:$0xff pattern:$0x75316420]
  %v808 = vld.sshfl [vmem:[#allocation1 + $0x10] sm:$0xff pattern:$0x75316420]
  %809 = vrot.lane.b32.xlu0 %v806, 98
  %v810 = vpop.permute.xlu0 %809
  %811 = vrot.lane.b32.xlu0 %v807, 98
  %v812 = vpop.permute.xlu0 %811
  %813 = vrot.lane.b32.xlu0 %v808, 98
  %v814 = vpop.permute.xlu0 %813
  %v815 = vsel %vm796, %v810, %v812
  %v816 = vsel %vm796, %v812, %v814
  %v819 = vsel %vm576, %v797, 0.0
  %v820 = vsel %vm577, %v798, 0.0
  %v821 = vsel %vm578, %v815, 0.0
  %v822 = vsel %vm579, %v816, 0.0
  %v823 = vld [vmem:[#allocation3 + $0x4] sm:$0xff]
  %v824 = vld [vmem:[#allocation3 + $0xc] sm:$0xf]
  %v825 = vld [vmem:[#allocation3 + $0x14] sm:$0xff]
  %v826 = vld [vmem:[#allocation3 + $0x1c] sm:$0xf]
  %829 = vst [vmem:[#allocation1] ss:$2 sm:$0xff] %v823
  %s830 = scalar_lea.vmem [#allocation1], 16
  %831 = vst [vmem:[%s830] ss:$2 sm:$0xff] %v824
  %v832 = vld.sshfl [vmem:[#allocation1] sm:$0xff pattern:$0x75316420]
  %v833 = vld.sshfl [vmem:[#allocation1 + $0x8] sm:$0xff pattern:$0x75316420]
  %v834 = vld.sshfl [vmem:[#allocation1 + $0x10] sm:$0xff pattern:$0x75316420]
  %835 = vrot.lane.b32.xlu0 %v832, 96
  %v836 = vpop.permute.xlu0 %835
  %837 = vrot.lane.b32.xlu0 %v833, 96
  %v838 = vpop.permute.xlu0 %837
  %839 = vrot.lane.b32.xlu0 %v834, 96
  %v840 = vpop.permute.xlu0 %839
  %vm841 = vcmask 785408
  %v842 = vsel %vm841, %v836, %v838
  %v843 = vsel %vm841, %v838, %v840
  %848 = vst [vmem:[#allocation1] ss:$2 sm:$0xff] %v825
  %s849 = scalar_lea.vmem [#allocation1], 16
  %850 = vst [vmem:[%s849] ss:$2 sm:$0xff] %v826
  %v851 = vld.sshfl [vmem:[#allocation1] sm:$0xff pattern:$0x75316420]
  %v852 = vld.sshfl [vmem:[#allocation1 + $0x8] sm:$0xff pattern:$0x75316420]
  %v853 = vld.sshfl [vmem:[#allocation1 + $0x10] sm:$0xff pattern:$0x75316420]
  %854 = vrot.lane.b32.xlu0 %v851, 96
  %v855 = vpop.permute.xlu0 %854
  %856 = vrot.lane.b32.xlu0 %v852, 96
  %v857 = vpop.permute.xlu0 %856
  %858 = vrot.lane.b32.xlu0 %v853, 96
  %v859 = vpop.permute.xlu0 %858
  %v860 = vsel %vm841, %v855, %v857
  %v861 = vsel %vm841, %v857, %v859
  %v864 = vld [vmem:[#allocation3 + $0x4] sm:$0xff]
  %v865 = vld [vmem:[#allocation3 + $0xc] sm:$0xf]
  %v866 = vld [vmem:[#allocation3 + $0x14] sm:$0xff]
  %v867 = vld [vmem:[#allocation3 + $0x1c] sm:$0xf]
  %870 = vst [vmem:[#allocation1] ss:$2 sm:$0xff] %v864
  %s871 = scalar_lea.vmem [#allocation1], 16
  %872 = vst [vmem:[%s871] ss:$2 sm:$0xff] %v865
  %v873 = vld.sshfl [vmem:[#allocation1] sm:$0xff pattern:$0x75316420]
  %v874 = vld.sshfl [vmem:[#allocation1 + $0x8] sm:$0xff pattern:$0x75316420]
  %v875 = vld.sshfl [vmem:[#allocation1 + $0x10] sm:$0xff pattern:$0x75316420]
  %876 = vrot.lane.b32.xlu0 %v873, 94
  %v877 = vpop.permute.xlu0 %876
  %878 = vrot.lane.b32.xlu0 %v874, 94
  %v879 = vpop.permute.xlu0 %878
  %880 = vrot.lane.b32.xlu0 %v875, 94
  %v881 = vpop.permute.xlu0 %880
  %vm882 = vcmask 769024
  %v883 = vsel %vm882, %v877, %v879
  %v884 = vsel %vm882, %v879, %v881
  %889 = vst [vmem:[#allocation1] ss:$2 sm:$0xff] %v866
  %s890 = scalar_lea.vmem [#allocation1], 16
  %891 = vst [vmem:[%s890] ss:$2 sm:$0xff] %v867
  %v892 = vld.sshfl [vmem:[#allocation1] sm:$0xff pattern:$0x75316420]
  %v893 = vld.sshfl [vmem:[#allocation1 + $0x8] sm:$0xff pattern:$0x75316420]
  %v894 = vld.sshfl [vmem:[#allocation1 + $0x10] sm:$0xff pattern:$0x75316420]
  %895 = vrot.lane.b32.xlu0 %v892, 94
  %v896 = vpop.permute.xlu0 %895
  %897 = vrot.lane.b32.xlu0 %v893, 94
  %v898 = vpop.permute.xlu0 %897
  %899 = vrot.lane.b32.xlu0 %v894, 94
  %v900 = vpop.permute.xlu0 %899
  %v901 = vsel %vm882, %v896, %v898
  %v902 = vsel %vm882, %v898, %v900
  %v905 = vsel %vm670, %v883, 0.0
  %v906 = vsel %vm671, %v884, 0.0
  %v907 = vsel %vm672, %v901, 0.0
  %v908 = vsel %vm673, %v902, 0.0
  %v909 = vld [vmem:[#allocation2] sm:$0xff]
  %v910 = vld [vmem:[#allocation2 + $0x8] sm:$0xf]
  %v911 = vld [vmem:[#allocation2 + $0x10] sm:$0xff]
  %v912 = vld [vmem:[#allocation2 + $0x18] sm:$0xf]
  %915 = vst [vmem:[#allocation1] ss:$2 sm:$0xff] %v909
  %s916 = scalar_lea.vmem [#allocation1], 16
  %917 = vst [vmem:[%s916] ss:$2 sm:$0xff] %v910
  %v918 = vld.sshfl [vmem:[#allocation1] sm:$0xff pattern:$0x75316420]
  %v919 = vld.sshfl [vmem:[#allocation1 + $0x8] sm:$0xff pattern:$0x75316420]
  %v920 = vld.sshfl [vmem:[#allocation1 + $0x10] sm:$0xff pattern:$0x75316420]
  %921 = vrot.lane.b32.xlu0 %v918, 34
  %v922 = vpop.permute.xlu0 %921
  %923 = vrot.lane.b32.xlu0 %v919, 34
  %v924 = vpop.permute.xlu0 %923
  %925 = vrot.lane.b32.xlu0 %v920, 34
  %v926 = vpop.permute.xlu0 %925
  %v927 = vsel %vm549, %v922, %v924
  %v928 = vsel %vm549, %v924, %v926
  %933 = vst [vmem:[#allocation1] ss:$2 sm:$0xff] %v911
  %s934 = scalar_lea.vmem [#allocation1], 16
  %935 = vst [vmem:[%s934] ss:$2 sm:$0xff] %v912
  %v936 = vld.sshfl [vmem:[#allocation1] sm:$0xff pattern:$0x75316420]
  %v937 = vld.sshfl [vmem:[#allocation1 + $0x8] sm:$0xff pattern:$0x75316420]
  %v938 = vld.sshfl [vmem:[#allocation1 + $0x10] sm:$0xff pattern:$0x75316420]
  %939 = vrot.lane.b32.xlu0 %v936, 34
  %v940 = vpop.permute.xlu0 %939
  %941 = vrot.lane.b32.xlu0 %v937, 34
  %v942 = vpop.permute.xlu0 %941
  %943 = vrot.lane.b32.xlu0 %v938, 34
  %v944 = vpop.permute.xlu0 %943
  %v945 = vsel %vm549, %v940, %v942
  %v946 = vsel %vm549, %v942, %v944
  %v949 = vsel %vm576, %v927, 0.0
  %v950 = vsel %vm577, %v928, 0.0
  %v951 = vsel %vm578, %v945, 0.0
  %v952 = vsel %vm579, %v946, 0.0
  %v953 = vld [vmem:[#allocation2] sm:$0xff]
  %v954 = vld [vmem:[#allocation2 + $0x8] sm:$0xf]
  %v955 = vld [vmem:[#allocation2 + $0x10] sm:$0xff]
  %v956 = vld [vmem:[#allocation2 + $0x18] sm:$0xf]
  %959 = vst [vmem:[#allocation1] ss:$2 sm:$0xff] %v953
  %s960 = scalar_lea.vmem [#allocation1], 16
  %961 = vst [vmem:[%s960] ss:$2 sm:$0xff] %v954
  %v962 = vld.sshfl [vmem:[#allocation1] sm:$0xff pattern:$0x75316420]
  %v963 = vld.sshfl [vmem:[#allocation1 + $0x8] sm:$0xff pattern:$0x75316420]
  %v964 = vld.sshfl [vmem:[#allocation1 + $0x10] sm:$0xff pattern:$0x75316420]
  %965 = vrot.lane.b32.xlu0 %v962, 32
  %v966 = vpop.permute.xlu0 %965
  %967 = vrot.lane.b32.xlu0 %v963, 32
  %v968 = vpop.permute.xlu0 %967
  %969 = vrot.lane.b32.xlu0 %v964, 32
  %v970 = vpop.permute.xlu0 %969
  %v971 = vsel %vm602, %v966, %v968
  %v972 = vsel %vm602, %v968, %v970
  %975 = vst [vmem:[#allocation1] ss:$2 sm:$0xff] %v955
  %s976 = scalar_lea.vmem [#allocation1], 16
  %977 = vst [vmem:[%s976] ss:$2 sm:$0xff] %v956
  %v978 = vld.sshfl [vmem:[#allocation1] sm:$0xff pattern:$0x75316420]
  %v979 = vld.sshfl [vmem:[#allocation1 + $0x8] sm:$0xff pattern:$0x75316420]
  %v980 = vld.sshfl [vmem:[#allocation1 + $0x10] sm:$0xff pattern:$0x75316420]
  %981 = vrot.lane.b32.xlu0 %v978, 32
  %v982 = vpop.permute.xlu0 %981
  %983 = vrot.lane.b32.xlu0 %v979, 32
  %v984 = vpop.permute.xlu0 %983
  %985 = vrot.lane.b32.xlu0 %v980, 32
  %v986 = vpop.permute.xlu0 %985
  %v987 = vsel %vm602, %v982, %v984
  %v988 = vsel %vm602, %v984, %v986
  %v989 = vld [vmem:[#allocation2] sm:$0xff]
  %v990 = vld [vmem:[#allocation2 + $0x8] sm:$0xf]
  %v991 = vld [vmem:[#allocation2 + $0x10] sm:$0xff]
  %v992 = vld [vmem:[#allocation2 + $0x18] sm:$0xf]
  %995 = vst [vmem:[#allocation1] ss:$2 sm:$0xff] %v989
  %s996 = scalar_lea.vmem [#allocation1], 16
  %997 = vst [vmem:[%s996] ss:$2 sm:$0xff] %v990
  %v998 = vld.sshfl [vmem:[#allocation1] sm:$0xff pattern:$0x75316420]
  %v999 = vld.sshfl [vmem:[#allocation1 + $0x8] sm:$0xff pattern:$0x75316420]
  %v1000 = vld.sshfl [vmem:[#allocation1 + $0x10] sm:$0xff pattern:$0x75316420]
  %1001 = vrot.lane.b32.xlu0 %v998, 30
  %v1002 = vpop.permute.xlu0 %1001
  %1003 = vrot.lane.b32.xlu0 %v999, 30
  %v1004 = vpop.permute.xlu0 %1003
  %1005 = vrot.lane.b32.xlu0 %v1000, 30
  %v1006 = vpop.permute.xlu0 %1005
  %v1007 = vsel %vm643, %v1002, %v1004
  %v1008 = vsel %vm643, %v1004, %v1006
  %1013 = vst [vmem:[#allocation1] ss:$2 sm:$0xff] %v991
  %s1014 = scalar_lea.vmem [#allocation1], 16
  %1015 = vst [vmem:[%s1014] ss:$2 sm:$0xff] %v992
  %v1016 = vld.sshfl [vmem:[#allocation1] sm:$0xff pattern:$0x75316420]
  %v1017 = vld.sshfl [vmem:[#allocation1 + $0x8] sm:$0xff pattern:$0x75316420]
  %v1018 = vld.sshfl [vmem:[#allocation1 + $0x10] sm:$0xff pattern:$0x75316420]
  %1019 = vrot.lane.b32.xlu0 %v1016, 30
  %v1020 = vpop.permute.xlu0 %1019
  %1021 = vrot.lane.b32.xlu0 %v1017, 30
  %v1022 = vpop.permute.xlu0 %1021
  %1023 = vrot.lane.b32.xlu0 %v1018, 30
  %v1024 = vpop.permute.xlu0 %1023
  %v1025 = vsel %vm643, %v1020, %v1022
  %v1026 = vsel %vm643, %v1022, %v1024
  %v1029 = vsel %vm670, %v1007, 0.0
  %v1030 = vsel %vm671, %v1008, 0.0
  %v1031 = vsel %vm672, %v1025, 0.0
  %v1032 = vsel %vm673, %v1026, 0.0
  %v1033 = vld [vmem:[#allocation2] sm:$0xff]
  %v1034 = vld [vmem:[#allocation2 + $0x8] sm:$0xf]
  %v1035 = vld [vmem:[#allocation2 + $0x10] sm:$0xff]
  %v1036 = vld [vmem:[#allocation2 + $0x18] sm:$0xf]
  %1039 = vst [vmem:[#allocation1] ss:$2 sm:$0xff] %v1033
  %s1040 = scalar_lea.vmem [#allocation1], 16
  %1041 = vst [vmem:[%s1040] ss:$2 sm:$0xff] %v1034
  %v1042 = vld.sshfl [vmem:[#allocation1] sm:$0xff pattern:$0x75316420]
  %v1043 = vld.sshfl [vmem:[#allocation1 + $0x8] sm:$0xff pattern:$0x75316420]
  %v1044 = vld.sshfl [vmem:[#allocation1 + $0x10] sm:$0xff pattern:$0x75316420]
  %1045 = vrot.lane.b32.xlu0 %v1042, 2
  %v1046 = vpop.permute.xlu0 %1045
  %1047 = vrot.lane.b32.xlu0 %v1043, 2
  %v1048 = vpop.permute.xlu0 %1047
  %1049 = vrot.lane.b32.xlu0 %v1044, 2
  %v1050 = vpop.permute.xlu0 %1049
  %v1051 = vsel %vm696, %v1046, %v1048
  %v1052 = vsel %vm696, %v1048, %v1050
  %1057 = vst [vmem:[#allocation1] ss:$2 sm:$0xff] %v1035
  %s1058 = scalar_lea.vmem [#allocation1], 16
  %1059 = vst [vmem:[%s1058] ss:$2 sm:$0xff] %v1036
  %v1060 = vld.sshfl [vmem:[#allocation1] sm:$0xff pattern:$0x75316420]
  %v1061 = vld.sshfl [vmem:[#allocation1 + $0x8] sm:$0xff pattern:$0x75316420]
  %v1062 = vld.sshfl [vmem:[#allocation1 + $0x10] sm:$0xff pattern:$0x75316420]
  %1063 = vrot.lane.b32.xlu0 %v1060, 2
  %v1064 = vpop.permute.xlu0 %1063
  %1065 = vrot.lane.b32.xlu0 %v1061, 2
  %v1066 = vpop.permute.xlu0 %1065
  %1067 = vrot.lane.b32.xlu0 %v1062, 2
  %v1068 = vpop.permute.xlu0 %1067
  %v1069 = vsel %vm696, %v1064, %v1066
  %v1070 = vsel %vm696, %v1066, %v1068
  %v1073 = vsel %vm576, %v1051, 0.0
  %v1074 = vsel %vm577, %v1052, 0.0
  %v1075 = vsel %vm578, %v1069, 0.0
  %v1076 = vsel %vm579, %v1070, 0.0
  %v1077 = vld [vmem:[#allocation2 + $0x4] sm:$0xff]
  %v1078 = vld [vmem:[#allocation2 + $0x14] sm:$0xff]
  %1080 = vst [vmem:[#allocation1] ss:$2 sm:$0xff] %v1077
  %v1081 = vld.sshfl [vmem:[#allocation1] sm:$0xff pattern:$0x75316420]
  %v1082 = vld.sshfl [vmem:[#allocation1 + $0x8] sm:$0xff pattern:$0x75316420]
  %1086 = vst [vmem:[#allocation1] ss:$2 sm:$0xff] %v1078
  %v1087 = vld.sshfl [vmem:[#allocation1] sm:$0xff pattern:$0x75316420]
  %v1088 = vld.sshfl [vmem:[#allocation1 + $0x8] sm:$0xff pattern:$0x75316420]
  %v1091 = vld [vmem:[#allocation2 + $0x4] sm:$0xff]
  %v1092 = vld [vmem:[#allocation2 + $0xc] sm:$0xf]
  %v1093 = vld [vmem:[#allocation2 + $0x14] sm:$0xff]
  %v1094 = vld [vmem:[#allocation2 + $0x1c] sm:$0xf]
  %1097 = vst [vmem:[#allocation1] ss:$2 sm:$0xff] %v1091
  %s1098 = scalar_lea.vmem [#allocation1], 16
  %1099 = vst [vmem:[%s1098] ss:$2 sm:$0xff] %v1092
  %v1100 = vld.sshfl [vmem:[#allocation1] sm:$0xff pattern:$0x75316420]
  %v1101 = vld.sshfl [vmem:[#allocation1 + $0x8] sm:$0xff pattern:$0x75316420]
  %v1102 = vld.sshfl [vmem:[#allocation1 + $0x10] sm:$0xff pattern:$0x75316420]
  %1103 = vrot.lane.b32.xlu0 %v1100, 126
  %v1104 = vpop.permute.xlu0 %1103
  %1105 = vrot.lane.b32.xlu0 %v1101, 126
  %v1106 = vpop.permute.xlu0 %1105
  %1107 = vrot.lane.b32.xlu0 %v1102, 126
  %v1108 = vpop.permute.xlu0 %1107
  %v1109 = vsel %vm751, %v1104, %v1106
  %v1110 = vsel %vm751, %v1106, %v1108
  %1115 = vst [vmem:[#allocation1] ss:$2 sm:$0xff] %v1093
  %s1116 = scalar_lea.vmem [#allocation1], 16
  %1117 = vst [vmem:[%s1116] ss:$2 sm:$0xff] %v1094
  %v1118 = vld.sshfl [vmem:[#allocation1] sm:$0xff pattern:$0x75316420]
  %v1119 = vld.sshfl [vmem:[#allocation1 + $0x8] sm:$0xff pattern:$0x75316420]
  %v1120 = vld.sshfl [vmem:[#allocation1 + $0x10] sm:$0xff pattern:$0x75316420]
  %1121 = vrot.lane.b32.xlu0 %v1118, 126
  %v1122 = vpop.permute.xlu0 %1121
  %1123 = vrot.lane.b32.xlu0 %v1119, 126
  %v1124 = vpop.permute.xlu0 %1123
  %1125 = vrot.lane.b32.xlu0 %v1120, 126
  %v1126 = vpop.permute.xlu0 %1125
  %v1127 = vsel %vm751, %v1122, %v1124
  %v1128 = vsel %vm751, %v1124, %v1126
  %v1131 = vsel %vm670, %v1109, 0.0
  %v1132 = vsel %vm671, %v1110, 0.0
  %v1133 = vsel %vm672, %v1127, 0.0
  %v1134 = vsel %vm673, %v1128, 0.0
  %v1135 = vld [vmem:[#allocation2 + $0x4] sm:$0xff]
  %v1136 = vld [vmem:[#allocation2 + $0xc] sm:$0xf]
  %v1137 = vld [vmem:[#allocation2 + $0x14] sm:$0xff]
  %v1138 = vld [vmem:[#allocation2 + $0x1c] sm:$0xf]
  %1141 = vst [vmem:[#allocation1] ss:$2 sm:$0xff] %v1135
  %s1142 = scalar_lea.vmem [#allocation1], 16
  %1143 = vst [vmem:[%s1142] ss:$2 sm:$0xff] %v1136
  %v1144 = vld.sshfl [vmem:[#allocation1] sm:$0xff pattern:$0x75316420]
  %v1145 = vld.sshfl [vmem:[#allocation1 + $0x8] sm:$0xff pattern:$0x75316420]
  %v1146 = vld.sshfl [vmem:[#allocation1 + $0x10] sm:$0xff pattern:$0x75316420]
  %1147 = vrot.lane.b32.xlu0 %v1144, 98
  %v1148 = vpop.permute.xlu0 %1147
  %1149 = vrot.lane.b32.xlu0 %v1145, 98
  %v1150 = vpop.permute.xlu0 %1149
  %1151 = vrot.lane.b32.xlu0 %v1146, 98
  %v1152 = vpop.permute.xlu0 %1151
  %v1153 = vsel %vm796, %v1148, %v1150
  %v1154 = vsel %vm796, %v1150, %v1152
  %1159 = vst [vmem:[#allocation1] ss:$2 sm:$0xff] %v1137
  %s1160 = scalar_lea.vmem [#allocation1], 16
  %1161 = vst [vmem:[%s1160] ss:$2 sm:$0xff] %v1138
  %v1162 = vld.sshfl [vmem:[#allocation1] sm:$0xff pattern:$0x75316420]
  %v1163 = vld.sshfl [vmem:[#allocation1 + $0x8] sm:$0xff pattern:$0x75316420]
  %v1164 = vld.sshfl [vmem:[#allocation1 + $0x10] sm:$0xff pattern:$0x75316420]
  %1165 = vrot.lane.b32.xlu0 %v1162, 98
  %v1166 = vpop.permute.xlu0 %1165
  %1167 = vrot.lane.b32.xlu0 %v1163, 98
  %v1168 = vpop.permute.xlu0 %1167
  %1169 = vrot.lane.b32.xlu0 %v1164, 98
  %v1170 = vpop.permute.xlu0 %1169
  %v1171 = vsel %vm796, %v1166, %v1168
  %v1172 = vsel %vm796, %v1168, %v1170
  %v1175 = vsel %vm576, %v1153, 0.0
  %v1176 = vsel %vm577, %v1154, 0.0
  %v1177 = vsel %vm578, %v1171, 0.0
  %v1178 = vsel %vm579, %v1172, 0.0
  %v1179 = vld [vmem:[#allocation2 + $0x4] sm:$0xff]
  %v1180 = vld [vmem:[#allocation2 + $0xc] sm:$0xf]
  %v1181 = vld [vmem:[#allocation2 + $0x14] sm:$0xff]
  %v1182 = vld [vmem:[#allocation2 + $0x1c] sm:$0xf]
  %1185 = vst [vmem:[#allocation1] ss:$2 sm:$0xff] %v1179
  %s1186 = scalar_lea.vmem [#allocation1], 16
  %1187 = vst [vmem:[%s1186] ss:$2 sm:$0xff] %v1180
  %v1188 = vld.sshfl [vmem:[#allocation1] sm:$0xff pattern:$0x75316420]
  %v1189 = vld.sshfl [vmem:[#allocation1 + $0x8] sm:$0xff pattern:$0x75316420]
  %v1190 = vld.sshfl [vmem:[#allocation1 + $0x10] sm:$0xff pattern:$0x75316420]
  %1191 = vrot.lane.b32.xlu0 %v1188, 96
  %v1192 = vpop.permute.xlu0 %1191
  %1193 = vrot.lane.b32.xlu0 %v1189, 96
  %v1194 = vpop.permute.xlu0 %1193
  %1195 = vrot.lane.b32.xlu0 %v1190, 96
  %v1196 = vpop.permute.xlu0 %1195
  %v1197 = vsel %vm841, %v1192, %v1194
  %v1198 = vsel %vm841, %v1194, %v1196
  %1201 = vst [vmem:[#allocation1] ss:$2 sm:$0xff] %v1181
  %s1202 = scalar_lea.vmem [#allocation1], 16
  %1203 = vst [vmem:[%s1202] ss:$2 sm:$0xff] %v1182
  %v1204 = vld.sshfl [vmem:[#allocation1] sm:$0xff pattern:$0x75316420]
  %v1205 = vld.sshfl [vmem:[#allocation1 + $0x8] sm:$0xff pattern:$0x75316420]
  %v1206 = vld.sshfl [vmem:[#allocation1 + $0x10] sm:$0xff pattern:$0x75316420]
  %1207 = vrot.lane.b32.xlu0 %v1204, 96
  %v1208 = vpop.permute.xlu0 %1207
  %1209 = vrot.lane.b32.xlu0 %v1205, 96
  %v1210 = vpop.permute.xlu0 %1209
  %1211 = vrot.lane.b32.xlu0 %v1206, 96
  %v1212 = vpop.permute.xlu0 %1211
  %v1213 = vsel %vm841, %v1208, %v1210
  %v1214 = vsel %vm841, %v1210, %v1212
  %v1215 = vld [vmem:[#allocation2 + $0x4] sm:$0xff]
  %v1216 = vld [vmem:[#allocation2 + $0xc] sm:$0xf]
  %v1217 = vld [vmem:[#allocation2 + $0x14] sm:$0xff]
  %v1218 = vld [vmem:[#allocation2 + $0x1c] sm:$0xf]
  %1221 = vst [vmem:[#allocation1] ss:$2 sm:$0xff] %v1215
  %s1222 = scalar_lea.vmem [#allocation1], 16
  %1223 = vst [vmem:[%s1222] ss:$2 sm:$0xff] %v1216
  %v1224 = vld.sshfl [vmem:[#allocation1] sm:$0xff pattern:$0x75316420]
  %v1225 = vld.sshfl [vmem:[#allocation1 + $0x8] sm:$0xff pattern:$0x75316420]
  %v1226 = vld.sshfl [vmem:[#allocation1 + $0x10] sm:$0xff pattern:$0x75316420]
  %1227 = vrot.lane.b32.xlu0 %v1224, 94
  %v1228 = vpop.permute.xlu0 %1227
  %1229 = vrot.lane.b32.xlu0 %v1225, 94
  %v1230 = vpop.permute.xlu0 %1229
  %1231 = vrot.lane.b32.xlu0 %v1226, 94
  %v1232 = vpop.permute.xlu0 %1231
  %v1233 = vsel %vm882, %v1228, %v1230
  %v1234 = vsel %vm882, %v1230, %v1232
  %1239 = vst [vmem:[#allocation1] ss:$2 sm:$0xff] %v1217
  %s1240 = scalar_lea.vmem [#allocation1], 16
  %1241 = vst [vmem:[%s1240] ss:$2 sm:$0xff] %v1218
  %v1242 = vld.sshfl [vmem:[#allocation1] sm:$0xff pattern:$0x75316420]
  %v1243 = vld.sshfl [vmem:[#allocation1 + $0x8] sm:$0xff pattern:$0x75316420]
  %v1244 = vld.sshfl [vmem:[#allocation1 + $0x10] sm:$0xff pattern:$0x75316420]
  %1245 = vrot.lane.b32.xlu0 %v1242, 94
  %v1246 = vpop.permute.xlu0 %1245
  %1247 = vrot.lane.b32.xlu0 %v1243, 94
  %v1248 = vpop.permute.xlu0 %1247
  %1249 = vrot.lane.b32.xlu0 %v1244, 94
  %v1250 = vpop.permute.xlu0 %1249
  %v1251 = vsel %vm882, %v1246, %v1248
  %v1252 = vsel %vm882, %v1248, %v1250
  %v1255 = vsel %vm670, %v1233, 0.0
  %v1256 = vsel %vm671, %v1234, 0.0
  %v1257 = vsel %vm672, %v1251, 0.0
  %v1258 = vsel %vm673, %v1252, 0.0
  %v1259 = vrot.slane %v229, 4
  %v1260 = vrot.slane %v230, 4
  %v1261 = vrot.slane %v245, 4
  %v1262 = vrot.slane %v246, 4
  %v1271 = vrot.slane %v341, 4
  %v1272 = vrot.slane %v342, 4
  %v1273 = vrot.slane %v343, 4
  %v1274 = vrot.slane %v344, 4
  %v1283 = vrot.slane %v400, 4
  %v1284 = vrot.slane %v401, 4
  %v1285 = vrot.slane %v402, 4
  %v1286 = vrot.slane %v403, 4
  %v1291 = vrot.slane %v468, 4
  %v1292 = vrot.slane %v469, 4
  %v1293 = vrot.slane %v484, 4
  %v1294 = vrot.slane %v485, 4
  %v1303 = vrot.slane %v580, 4
  %v1304 = vrot.slane %v581, 4
  %v1305 = vrot.slane %v582, 4
  %v1306 = vrot.slane %v583, 4
  %v1315 = vrot.slane %v674, 4
  %v1316 = vrot.slane %v675, 4
  %v1317 = vrot.slane %v676, 4
  %v1318 = vrot.slane %v677, 4
  %v1323 = vrot.slane %v727, 4
  %v1324 = vrot.slane %v728, 4
  %v1325 = vrot.slane %v731, 4
  %v1326 = vrot.slane %v732, 4
  %v1335 = vrot.slane %v819, 4
  %v1336 = vrot.slane %v820, 4
  %v1337 = vrot.slane %v821, 4
  %v1338 = vrot.slane %v822, 4
  %vm1343 = vcmask 1043456
  %v1344 = vsel %vm1343, %v206, %v1259
  %v1345 = vsel %vm1343, %v207, %v1260
  %v1346 = vsel %vm1343, %v208, %v1261
  %v1347 = vsel %vm1343, %v209, %v1262
  %v1348 = vsel %vm1343, %v296, %v1271
  %v1349 = vsel %vm1343, %v297, %v1272
  %v1350 = vsel %vm1343, %v298, %v1273
  %v1351 = vsel %vm1343, %v299, %v1274
  %v1352 = vsel %vm1343, %v349, %v1283
  %v1353 = vsel %vm1343, %v350, %v1284
  %v1354 = vsel %vm1343, %v355, %v1285
  %v1355 = vsel %vm1343, %v356, %v1286
  %v1356 = vsel %vm1343, %v445, %v1291
  %v1357 = vsel %vm1343, %v446, %v1292
  %v1358 = vsel %vm1343, %v447, %v1293
  %v1359 = vsel %vm1343, %v448, %v1294
  %v1360 = vsel %vm1343, %v527, %v1303
  %v1361 = vsel %vm1343, %v528, %v1304
  %v1362 = vsel %vm1343, %v529, %v1305
  %v1363 = vsel %vm1343, %v530, %v1306
  %v1364 = vsel %vm1343, %v603, %v1315
  %v1365 = vsel %vm1343, %v604, %v1316
  %v1366 = vsel %vm1343, %v621, %v1317
  %v1367 = vsel %vm1343, %v622, %v1318
  %v1368 = vsel %vm1343, %v719, %v1323
  %v1369 = vsel %vm1343, %v720, %v1324
  %v1370 = vsel %vm1343, %v721, %v1325
  %v1371 = vsel %vm1343, %v722, %v1326
  %v1372 = vsel %vm1343, %v774, %v1335
  %v1373 = vsel %vm1343, %v775, %v1336
  %v1374 = vsel %vm1343, %v776, %v1337
  %v1375 = vsel %vm1343, %v777, %v1338
  %v1380 = vrot.slane %v905, 4
  %v1381 = vrot.slane %v906, 4
  %v1382 = vrot.slane %v907, 4
  %v1383 = vrot.slane %v908, 4
  %v1388 = vrot.slane %v971, 4
  %v1389 = vrot.slane %v972, 4
  %v1390 = vrot.slane %v987, 4
  %v1391 = vrot.slane %v988, 4
  %v1400 = vrot.slane %v1073, 4
  %v1401 = vrot.slane %v1074, 4
  %v1402 = vrot.slane %v1075, 4
  %v1403 = vrot.slane %v1076, 4
  %v1412 = vrot.slane %v1131, 4
  %v1413 = vrot.slane %v1132, 4
  %v1414 = vrot.slane %v1133, 4
  %v1415 = vrot.slane %v1134, 4
  %v1420 = vrot.slane %v1197, 4
  %v1421 = vrot.slane %v1198, 4
  %v1422 = vrot.slane %v1213, 4
  %v1423 = vrot.slane %v1214, 4
  %v1428 = vsel %vm1343, %v842, %v1380
  %v1429 = vsel %vm1343, %v843, %v1381
  %v1430 = vsel %vm1343, %v860, %v1382
  %v1431 = vsel %vm1343, %v861, %v1383
  %v1432 = vsel %vm1343, %v949, %v1388
  %v1433 = vsel %vm1343, %v950, %v1389
  %v1434 = vsel %vm1343, %v951, %v1390
  %v1435 = vsel %vm1343, %v952, %v1391
  %v1436 = vsel %vm1343, %v1029, %v1400
  %v1437 = vsel %vm1343, %v1030, %v1401
  %v1438 = vsel %vm1343, %v1031, %v1402
  %v1439 = vsel %vm1343, %v1032, %v1403
  %v1440 = vsel %vm1343, %v1081, %v1412
  %v1441 = vsel %vm1343, %v1082, %v1413
  %v1442 = vsel %vm1343, %v1087, %v1414
  %v1443 = vsel %vm1343, %v1088, %v1415
  %v1444 = vsel %vm1343, %v1175, %v1420
  %v1445 = vsel %vm1343, %v1176, %v1421
  %v1446 = vsel %vm1343, %v1177, %v1422
  %v1447 = vsel %vm1343, %v1178, %v1423
  %v1448 = vsel %vm1343, %v1255, 1.0
  %v1449 = vsel %vm1343, %v1256, 1.0
  %v1450 = vsel %vm1343, %v1257, 1.0
  %v1451 = vsel %vm1343, %v1258, 1.0
  %v1452 = vld [vmem:[%s2] sm:$0xff]
  %v1453 = vld [vmem:[%s2 + $0x8] sm:$0xf]
  %vm1454 = vcmask 891904
  %v1456 = vsel %vm1454, %v1452, 0
  %v1459 = vsel %vm1454, %v1453, 0
  %vm1461 = vcmask 1044480
  %v1463 = vsel %vm1461, %v1448, 0
  %v1466 = vsel %vm1461, %v1449, 0
  %v1469 = vsel %vm1461, %v1450, 0
  %v1472 = vsel %vm1461, %v1451, 0
  %1474 = vmatpush.msra.mxu0 0.0
  %1475 = vmatpush.msra.mxu0 0.0
  %1476 = vmatpush.msra.mxu0 %v1463
  %1477 = vmatpush.msra.mxu0 %v1444
  %1478 = vmatpush.msra.mxu0 %v1440
  %1479 = vmatpush.msra.mxu0 %v1436
  %1480 = vmatpush.msra.mxu0 %v1432
  %1481 = vmatpush.msra.mxu0 %v1428
  %1482 = vmatpush.msra.mxu0 %v1372
  %1483 = vmatpush.msra.mxu0 %v1368
  %1484 = vmatpush.msra.mxu0 %v1364
  %1485 = vmatpush.msra.mxu0 %v1360
  %1486 = vmatpush.msra.mxu0 %v1356
  %1487 = vmatpush.msra.mxu0 %v1352
  %1488 = vmatpush.msra.mxu0 %v1348
  %1489 = vmatpush.msra.mxu0 %v1344
  %1490 = vmatmul.f32.gmra.mxu0 %v1456
  %v1491 = vpop.f32.mrf.mxu0
  %v1492 = vadd.f32 0.0, %v1491
  %1493 = vmatmul.f32.gmra.mxu0 %v1459
  %v1494 = vpop.f32.mrf.mxu0
  %v1495 = vadd.f32 0.0, %v1494
  %1496 = vdwg.mxu0
  %1497 = vmatpush.msra.mxu0 0.0
  %1498 = vmatpush.msra.mxu0 0.0
  %1499 = vmatpush.msra.mxu0 %v1466
  %1500 = vmatpush.msra.mxu0 %v1445
  %1501 = vmatpush.msra.mxu0 %v1441
  %1502 = vmatpush.msra.mxu0 %v1437
  %1503 = vmatpush.msra.mxu0 %v1433
  %1504 = vmatpush.msra.mxu0 %v1429
  %1505 = vmatpush.msra.mxu0 %v1373
  %1506 = vmatpush.msra.mxu0 %v1369
  %1507 = vmatpush.msra.mxu0 %v1365
  %1508 = vmatpush.msra.mxu0 %v1361
  %1509 = vmatpush.msra.mxu0 %v1357
  %1510 = vmatpush.msra.mxu0 %v1353
  %1511 = vmatpush.msra.mxu0 %v1349
  %1512 = vmatpush.msra.mxu0 %v1345
  %1513 = vmatmul.f32.gmra.mxu0 %v1456
  %v1514 = vpop.f32.mrf.mxu0
  %v1515 = vadd.f32 0.0, %v1514
  %1516 = vmatmul.f32.gmra.mxu0 %v1459
  %v1517 = vpop.f32.mrf.mxu0
  %v1518 = vadd.f32 0.0, %v1517
  %1519 = vdwg.mxu0
  %1520 = vmatpush.msra.mxu0 0.0
  %1521 = vmatpush.msra.mxu0 0.0
  %1522 = vmatpush.msra.mxu0 %v1469
  %1523 = vmatpush.msra.mxu0 %v1446
  %1524 = vmatpush.msra.mxu0 %v1442
  %1525 = vmatpush.msra.mxu0 %v1438
  %1526 = vmatpush.msra.mxu0 %v1434
  %1527 = vmatpush.msra.mxu0 %v1430
  %1528 = vmatpush.msra.mxu0 %v1374
  %1529 = vmatpush.msra.mxu0 %v1370
  %1530 = vmatpush.msra.mxu0 %v1366
  %1531 = vmatpush.msra.mxu0 %v1362
  %1532 = vmatpush.msra.mxu0 %v1358
  %1533 = vmatpush.msra.mxu0 %v1354
  %1534 = vmatpush.msra.mxu0 %v1350
  %1535 = vmatpush.msra.mxu0 %v1346
  %1536 = vmatmul.f32.gmra.mxu0 %v1456
  %v1537 = vpop.f32.mrf.mxu0
  %v1538 = vadd.f32 0.0, %v1537
  %1539 = vmatmul.f32.gmra.mxu0 %v1459
  %v1540 = vpop.f32.mrf.mxu0
  %v1541 = vadd.f32 0.0, %v1540
  %1542 = vdwg.mxu0
  %1543 = vmatpush.msra.mxu0 0.0
  %1544 = vmatpush.msra.mxu0 0.0
  %1545 = vmatpush.msra.mxu0 %v1472
  %1546 = vmatpush.msra.mxu0 %v1447
  %1547 = vmatpush.msra.mxu0 %v1443
  %1548 = vmatpush.msra.mxu0 %v1439
  %1549 = vmatpush.msra.mxu0 %v1435
  %1550 = vmatpush.msra.mxu0 %v1431
  %1551 = vmatpush.msra.mxu0 %v1375
  %1552 = vmatpush.msra.mxu0 %v1371
  %1553 = vmatpush.msra.mxu0 %v1367
  %1554 = vmatpush.msra.mxu0 %v1363
  %1555 = vmatpush.msra.mxu0 %v1359
  %1556 = vmatpush.msra.mxu0 %v1355
  %1557 = vmatpush.msra.mxu0 %v1351
  %1558 = vmatpush.msra.mxu0 %v1347
  %1559 = vmatmul.f32.gmra.mxu0 %v1456
  %v1560 = vpop.f32.mrf.mxu0
  %v1561 = vadd.f32 0.0, %v1560
  %1562 = vmatmul.f32.gmra.mxu0 %v1459
  %v1563 = vpop.f32.mrf.mxu0
  %v1564 = vadd.f32 0.0, %v1563
  %1565 = vdwg.mxu0
  %v1566 = vmax.f32 %v1492, 0.0
  %v1567 = vmax.f32 %v1515, 0.0
  %v1568 = vmax.f32 %v1538, 0.0
  %v1569 = vmax.f32 %v1561, 0.0
  %v1574 = vrot.slane %v1566, 4
  %v1575 = vrot.slane %v1567, 4
  %v1576 = vrot.slane %v1568, 4
  %v1577 = vrot.slane %v1569, 4
  %v1582 = vadd.f32 %v1566, %v1574
  %v1583 = vadd.f32 %v1567, %v1575
  %v1584 = vadd.f32 %v1568, %v1576
  %v1585 = vadd.f32 %v1569, %v1577
  %v1586 = vmax.f32 %v1495, 0.0
  %v1587 = vmax.f32 %v1518, 0.0
  %v1588 = vmax.f32 %v1541, 0.0
  %v1589 = vmax.f32 %v1564, 0.0
  %v1590 = vadd.f32 %v1582, %v1586
  %v1591 = vadd.f32 %v1583, %v1587
  %v1592 = vadd.f32 %v1584, %v1588
  %v1593 = vadd.f32 %v1585, %v1589
  %v1596 = vrot.slane %v1591, 4
  %v1597 = vsel %vm1343, %v1590, %v1596
  %1599 = vst [vmem:[%s3] sm:$0xff] %v1597
  %v1602 = vrot.slane %v1593, 4
  %v1603 = vsel %vm1343, %v1592, %v1602
  %s1605 = scalar_lea.vmem %s3, 8
  %1606 = vst [vmem:[%s1605] sm:$0xff] %v1603
  // Predicated region
  $region14: #{triple_kernel_fourier_convolution.1} parent=0 // pred_check
    _
  $region15: #{triple_kernel_fourier_convolution.1} parent=0 // pred_check_branch
    %1608 = sbr.rel (0) target = $region17
  $region16: #{triple_kernel_fourier_convolution.1} parent=0 // pred_region
    _
  $region17: #{triple_kernel_fourier_convolution.1} parent=0 // pred_fallthru
    _
  // Predicated region
  $region18: #{triple_kernel_fourier_convolution.1} parent=0 // pred_check
    _
  $region19: #{triple_kernel_fourier_convolution.1} parent=0 // pred_check_branch
    %1610 = sbr.rel (0) target = $region21
  $region20: #{triple_kernel_fourier_convolution.1} parent=0 // pred_region
    _
  $region21: #{triple_kernel_fourier_convolution.1} parent=0 // pred_fallthru
    _

</llo_original>
